<compile_context>
chip_gen: v7x
topology: tpu7x:2x2x1
jax: 0.10.0
libtpu: 0.0.40
codegen_flags: <defaults>
</compile_context>

<pallas_src>
import functools
import math

import jax
import jax.numpy as jnp
from jax.experimental import pallas as pl
from jax.experimental.pallas import tpu as pltpu

_LANE = 128      # lane width (last dim)
_SUBLANE = 8     # sublane width (second-to-last dim, f32)


def _round_up(x, m):
    return ((x + m - 1) // m) * m


def _vmem_capacity_bytes():
    """Physical VMEM per TensorCore; conservative 64 MiB (v7x) if unknown."""
    try:
        cap = int(pltpu.get_tpu_info().vmem_capacity_bytes)
        if cap > 0:
            return cap
    except Exception:
        pass
    return 64 << 20


def _largest_divisor_tile(total, cap, align):
    """Largest multiple of `align` that divides `total` and is <= cap (total % align == 0)."""
    t = max(min(cap, total), align)
    t = max((t // align) * align, align)
    while total % t != 0:
        t -= align
    return t


# ---------------------------------------------------------------------------
# Kernels
# ---------------------------------------------------------------------------
def _fused_mlp_kernel(x_ref, *refs, num_layers, compute_dtype):
    """Whole MLP for one token tile. refs = (w0, b0, ..., w_{L-1}, b_{L-1}, o_ref).

    x_ref : [TILE_N, D0_p]   (any float dtype; cast to compute_dtype in-kernel)
    w_i   : [Din_p, Dout_p]  (compute_dtype; VMEM-resident across the grid)
    b_i   : [1, Dout_p]      (f32)
    o_ref : [TILE_N, DL_p]
    """
    o_ref = refs[-1]
    h = x_ref[...].astype(compute_dtype)
    for i in range(num_layers):
        w = refs[2 * i][...]
        b = refs[2 * i + 1][...]
        y = jnp.dot(h, w, preferred_element_type=jnp.float32) + b   # f32 accumulator
        if i < num_layers - 1:
            # ReLU in the compute dtype: for ReLU, cast-then-max == max-then-cast,
            # and bf16 vregs halve the epilogue live range on v6e/v7x.
            h = jnp.maximum(y.astype(compute_dtype), 0)
        else:
            h = y
    o_ref[...] = h.astype(o_ref.dtype)


def _linear_layer_kernel(x_ref, w_ref, b_ref, o_ref, *, apply_relu, compute_dtype):
    """Fallback single-layer kernel: weight streamed in Dout chunks along the grid."""
    y = jnp.dot(x_ref[...].astype(compute_dtype), w_ref[...],
                preferred_element_type=jnp.float32) + b_ref[...]
    if apply_relu:
        o_ref[...] = jnp.maximum(y, 0.0).astype(o_ref.dtype)
    else:
        o_ref[...] = y.astype(o_ref.dtype)


# ---------------------------------------------------------------------------
# Parameter init (matches nn.Linear: W [out, in], b [out]) + one-time prep.
# ---------------------------------------------------------------------------
def init_mlp_params(key, input_dim, hidden_dim, output_dim, num_layers,
                    dtype=jnp.float32):
    h = [hidden_dim] * (num_layers - 1)
    dims_in = [input_dim] + h
    dims_out = h + [output_dim]
    params = []
    for i, (n_in, n_out) in enumerate(zip(dims_in, dims_out)):
        kw, kb = jax.random.split(jax.random.fold_in(key, i))
        bound = 1.0 / math.sqrt(n_in)
        w = jax.random.uniform(kw, (n_out, n_in), dtype=dtype,
                               minval=-bound, maxval=bound)
        b = jax.random.uniform(kb, (n_out,), dtype=dtype,
                               minval=-bound, maxval=bound)
        params.append((w, b))
    return params


def prepare_mlp_params(params, compute_dtype=jnp.bfloat16):
    """One-time prep (NOT in the hot path): transpose W -> [Din, Dout], zero-pad feature
    dims to multiples of 128, cast W to the MXU compute dtype, keep b in f32 as [1, Dout_p]."""
    prepared, dims = [], []
    for (w, b) in params:
        d_out, d_in = w.shape
        d_in_p = _round_up(d_in, _LANE)
        d_out_p = _round_up(d_out, _LANE)
        w_p = jnp.zeros((d_in_p, d_out_p), dtype=compute_dtype)
        w_p = w_p.at[:d_in, :d_out].set(w.T.astype(compute_dtype))
        b_p = jnp.zeros((1, d_out_p), dtype=jnp.float32)
        b_p = b_p.at[0, :d_out].set(b.astype(jnp.float32))
        prepared.append((w_p, b_p))
        dims.append((d_in, d_out))
    return prepared, dims


# ---------------------------------------------------------------------------
# Fallback: one pallas_call per layer, weights streamed along Dout.
# ---------------------------------------------------------------------------
def _layerwise_forward(prepared, x2d, n, d_in, d_out, compute_dtype, out_dtype,
                       lead_shape, budget, vmem_limit):
    # TODO(synk): also tile the contraction (Din) axis if a single layer's Din_p slab
    # exceeds VMEM; this fallback only streams along Dout.
    num_layers = len(prepared)
    d_in_p = prepared[0][0].shape[0]
    tile_align = 16 if jnp.dtype(compute_dtype).itemsize == 2 else _SUBLANE

    n_p = _round_up(max(n, 1), tile_align)
    if (n_p != n) or (d_in_p != d_in):
        h = jnp.zeros((n_p, d_in_p), dtype=compute_dtype)
        h = h.at[:n, :d_in].set(x2d.astype(compute_dtype))
    else:
        h = x2d

    for li, (w_p, b_p) in enumerate(prepared):
        last = li == num_layers - 1
        din_p, dout_p = w_p.shape
        o_dtype = out_dtype if last else compute_dtype

        tile_o = _largest_divisor_tile(dout_p, 512, _LANE)
        tile_n = _largest_divisor_tile(n_p, 1024, tile_align)

        def _est(tn):
            return (2 * tn * din_p * h.dtype.itemsize
                    + 2 * tn * tile_o * jnp.dtype(o_dtype).itemsize
                    + 2 * din_p * tile_o * w_p.dtype.itemsize
                    + 2 * tn * tile_o * 4)

        while tile_n > tile_align and _est(tile_n) > budget:
            tile_n = _largest_divisor_tile(n_p, max(tile_n // 2, tile_align), tile_align)

        grid = (n_p // tile_n, dout_p // tile_o)
        kernel = functools.partial(_linear_layer_kernel, apply_relu=not last,
                                   compute_dtype=compute_dtype)
        h = pl.pallas_call(
            kernel,
            out_shape=jax.ShapeDtypeStruct((n_p, dout_p), o_dtype),
            grid=grid,
            in_specs=[pl.BlockSpec((tile_n, din_p), lambda i, j: (i, 0)),
                      pl.BlockSpec((din_p, tile_o), lambda i, j: (0, j)),
                      pl.BlockSpec((1, tile_o), lambda i, j: (0, j))],
            out_specs=pl.BlockSpec((tile_n, tile_o), lambda i, j: (i, j)),
            compiler_params=pltpu.CompilerParams(
                dimension_semantics=("parallel", "parallel"),
                vmem_limit_bytes=vmem_limit),
        )(h, w_p, b_p)

    d_out_p = prepared[-1][0].shape[1]
    y = h if (n_p == n and d_out_p == d_out) else h[:n, :d_out]
    return y.reshape(*lead_shape, d_out)


# ---------------------------------------------------------------------------
# Forward: single fused pallas_call over a token-tiled grid (preferred path).
# ---------------------------------------------------------------------------
def mlp_forward(prepared, dims, x, *, tile_n=512):
    num_layers = len(prepared)
    compute_dtype = prepared[0][0].dtype
    d_in, d_out = dims[0][0], dims[-1][1]
    d_in_p = prepared[0][0].shape[0]
    d_out_p = prepared[-1][0].shape[1]
    out_dtype = x.dtype

    lead_shape = x.shape[:-1]
    n = int(math.prod(lead_shape)) if lead_shape else 1
    x2d = x.reshape(n, d_in)

    # --- generation-aware VMEM budget (v5e/v6e: 128 MiB, v7x: 64 MiB) -------
    vmem_cap = _vmem_capacity_bytes()
    budget = int(0.80 * vmem_cap)        # headroom for Mosaic scratch / spills
    vmem_limit = int(0.90 * vmem_cap)

    itemsize_c = jnp.dtype(compute_dtype).itemsize
    itemsize_x = jnp.dtype(x.dtype).itemsize
    itemsize_o = jnp.dtype(out_dtype).itemsize
    weight_bytes = sum(int(w.size) * w.dtype.itemsize + int(b.size) * b.dtype.itemsize
                       for (w, b) in prepared)
    max_feat_p = max([d_in_p] + [w.shape[1] for (w, _) in prepared])

    # --- dtype-aware token tile (bf16 packs 16 rows per vreg) ----------------
    tile_align = 16 if itemsize_c == 2 else _SUBLANE
    n_ceil = _round_up(max(n, 1), tile_align)
    tile = max(min(_round_up(tile_n, tile_align), n_ceil), tile_align)
    min_tile = min(256, tile)            # never shrink below 256 rows; stream weights instead

    def _vmem_estimate(t):
        x_bytes = 2 * t * d_in_p * max(itemsize_c, itemsize_x)   # double-buffered x tile
        y_bytes = 2 * t * d_out_p * itemsize_o                   # double-buffered y tile
        act_bytes = 3 * t * max_feat_p * 4                       # f32 intermediates (headroom)
        return weight_bytes + x_bytes + y_bytes + act_bytes      # weights single-buffered

    while tile > min_tile and _vmem_estimate(tile) > budget:
        tile = max(_round_up(tile // 2, tile_align), min_tile)

    if _vmem_estimate(tile) <= budget:
        n_p = _round_up(max(n, 1), tile)
        grid_steps = n_p // tile

        # Pad/cast x only when actually needed (each wrapper pass over x is an extra
        # HBM round-trip); otherwise pass x as-is and cast inside the kernel.
        needs_in_pad = (d_in_p != d_in) or (n_p != n)
        if needs_in_pad:
            x_in = jnp.zeros((n_p, d_in_p), dtype=compute_dtype)
            x_in = x_in.at[:n, :d_in].set(x2d.astype(compute_dtype))
        else:
            x_in = x2d

        flops = 2 * n_p * sum(int(w.shape[0]) * int(w.shape[1]) for (w, _) in prepared)
        bytes_accessed = (int(x_in.size) * x_in.dtype.itemsize + weight_bytes
                          + n_p * d_out_p * itemsize_o)
        cost = pl.CostEstimate(flops=flops, transcendentals=0,
                               bytes_accessed=bytes_accessed)

        # Megacore split only pays off with real token parallelism; for tiny,
        # weight-dominated grids it just duplicates every weight DMA on both v7x cores.
        sems = ("parallel",) if grid_steps >= 4 else ("arbitrary",)

        def _fused_call(single_buffer_weights):
            in_specs = [pl.BlockSpec((tile, d_in_p), lambda i: (i, 0))]
            flat_params = []
            for (w_p, b_p) in prepared:
                if single_buffer_weights:
                    w_spec = pl.BlockSpec(w_p.shape, lambda i: (0, 0),
                                          pipeline_mode=pl.Buffered(1))
                    b_spec = pl.BlockSpec(b_p.shape, lambda i: (0, 0),
                                          pipeline_mode=pl.Buffered(1))
                else:
                    w_spec = pl.BlockSpec(w_p.shape, lambda i: (0, 0))
                    b_spec = pl.BlockSpec(b_p.shape, lambda i: (0, 0))
                in_specs += [w_spec, b_spec]
                flat_params += [w_p, b_p]
            out_specs = pl.BlockSpec((tile, d_out_p), lambda i: (i, 0))
            kernel = functools.partial(_fused_mlp_kernel, num_layers=num_layers,
                                       compute_dtype=compute_dtype)
            y_full = pl.pallas_call(
                kernel,
                out_shape=jax.ShapeDtypeStruct((n_p, d_out_p), out_dtype),
                grid=(grid_steps,),
                in_specs=in_specs,
                out_specs=out_specs,
                compiler_params=pltpu.CompilerParams(
                    dimension_semantics=sems,
                    vmem_limit_bytes=vmem_limit),
                cost_estimate=cost,
            )(x_in, *flat_params)
            return jax.block_until_ready(y_full)

        y_pad = None
        try:
            y_pad = _fused_call(True)            # single-buffered resident weights
        except Exception:
            try:
                y_pad = _fused_call(False)       # fall back to default buffering
            except Exception:
                y_pad = None

        if y_pad is not None:
            y = y_pad if (d_out_p == d_out and n_p == n) else y_pad[:n, :d_out]
            return y.reshape(*lead_shape, d_out)

    # Resident-weight plan does not fit (or failed to compile): stream weights per layer.
    return _layerwise_forward(prepared, x2d, n, d_in, d_out, compute_dtype, out_dtype,
                              lead_shape, budget, vmem_limit)


# ---------------------------------------------------------------------------
# Pure-JAX, precision-matched reference (bf16 matmuls, f32 accumulation).
# ---------------------------------------------------------------------------
def mlp_reference(params, x, compute_dtype=jnp.bfloat16):
    num_layers = len(params)
    h = x
    for i, (w, b) in enumerate(params):
        y = jnp.dot(h.astype(compute_dtype), w.T.astype(compute_dtype),
                    preferred_element_type=jnp.float32) + b.astype(jnp.float32)
        h = jax.nn.relu(y) if i < num_layers - 1 else y
    return h.astype(x.dtype)


if __name__ == "__main__":
    key = jax.random.PRNGKey(0)
    k_x, k_p = jax.random.split(key)

    batch, seq = 2, 8
    input_dim, hidden_dim, output_dim, num_layers = 32, 32, 16, 3

    x = jax.random.normal(k_x, (batch, seq, input_dim), dtype=jnp.float32)
    params = init_mlp_params(k_p, input_dim, hidden_dim, output_dim, num_layers)

    prepared, dims = prepare_mlp_params(params, compute_dtype=jnp.bfloat16)

    out = mlp_forward(prepared, dims, x)
    out = jax.block_until_ready(out)

    ref = mlp_reference(params, x, compute_dtype=jnp.bfloat16)
    assert out.shape == (batch, seq, output_dim), out.shape
    assert jnp.allclose(out, ref, atol=1e-3, rtol=1e-3), "mismatch vs reference"

    print("KERNEL_OK")
</pallas_src>

<mosaic_0001>
module attributes {stable_mosaic.version = 11 : i64} {
  func.func @_fused_mlp_kernel(%arg0: i32, %arg1: memref<16x128xbf16, #tpu.memory_space<vmem>>, %arg2: memref<128x128xbf16, #tpu.memory_space<vmem>>, %arg3: memref<1x128xf32, #tpu.memory_space<vmem>>, %arg4: memref<128x128xbf16, #tpu.memory_space<vmem>>, %arg5: memref<1x128xf32, #tpu.memory_space<vmem>>, %arg6: memref<128x128xbf16, #tpu.memory_space<vmem>>, %arg7: memref<1x128xf32, #tpu.memory_space<vmem>>, %arg8: memref<16x128xf32, #tpu.memory_space<vmem>>) attributes {dimension_semantics = [#tpu.dimension_semantics<arbitrary>], iteration_bounds = array<i64: 1>, scalar_prefetch = 0 : i64, scratch_operands = 0 : i64, tpu.core_type = #tpu.core_type<tc>, window_params = [{transform_indices = @transform_0, window_bounds = array<i64: 16, 128>}, {pipeline_mode = #tpu.pipeline_mode<synchronous>, transform_indices = @transform_1, window_bounds = array<i64: 128, 128>}, {pipeline_mode = #tpu.pipeline_mode<synchronous>, transform_indices = @transform_2, window_bounds = array<i64: 1, 128>}, {pipeline_mode = #tpu.pipeline_mode<synchronous>, transform_indices = @transform_3, window_bounds = array<i64: 128, 128>}, {pipeline_mode = #tpu.pipeline_mode<synchronous>, transform_indices = @transform_4, window_bounds = array<i64: 1, 128>}, {pipeline_mode = #tpu.pipeline_mode<synchronous>, transform_indices = @transform_5, window_bounds = array<i64: 128, 128>}, {pipeline_mode = #tpu.pipeline_mode<synchronous>, transform_indices = @transform_6, window_bounds = array<i64: 1, 128>}, {transform_indices = @transform_7, window_bounds = array<i64: 16, 128>}]} {
    %c0 = arith.constant 0 : index
    %c0_0 = arith.constant 0 : index
    %0 = vector.load %arg1[%c0, %c0_0] : memref<16x128xbf16, #tpu.memory_space<vmem>>, vector<16x128xbf16>
    %c0_1 = arith.constant 0 : index
    %c0_2 = arith.constant 0 : index
    %1 = vector.load %arg2[%c0_1, %c0_2] : memref<128x128xbf16, #tpu.memory_space<vmem>>, vector<128x128xbf16>
    %c0_3 = arith.constant 0 : index
    %c0_4 = arith.constant 0 : index
    %2 = vector.load %arg3[%c0_3, %c0_4] : memref<1x128xf32, #tpu.memory_space<vmem>>, vector<1x128xf32>
    %cst = arith.constant dense<0.000000e+00> : vector<16x128xf32>
    %3 = tpu.matmul %0, %1, %cst {dimension_numbers = #tpu.dot_dimension_numbers<[1], [0], [0], [1], [0, 0, 1, 1], [], []>} : vector<16x128xbf16>, vector<128x128xbf16>, vector<16x128xf32> -> vector<16x128xf32>
    %4 = vector.broadcast %2 : vector<1x128xf32> to vector<16x128xf32>
    %5 = arith.addf %3, %4 : vector<16x128xf32>
    %6 = arith.truncf %5 : vector<16x128xf32> to vector<16x128xbf16>
    %cst_5 = arith.constant 0.000000e+00 : bf16
    %7 = vector.broadcast %cst_5 : bf16 to vector<16x128xbf16>
    %8 = arith.maximumf %6, %7 : vector<16x128xbf16>
    %c0_6 = arith.constant 0 : index
    %c0_7 = arith.constant 0 : index
    %9 = vector.load %arg4[%c0_6, %c0_7] : memref<128x128xbf16, #tpu.memory_space<vmem>>, vector<128x128xbf16>
    %c0_8 = arith.constant 0 : index
    %c0_9 = arith.constant 0 : index
    %10 = vector.load %arg5[%c0_8, %c0_9] : memref<1x128xf32, #tpu.memory_space<vmem>>, vector<1x128xf32>
    %cst_10 = arith.constant dense<0.000000e+00> : vector<16x128xf32>
    %11 = tpu.matmul %8, %9, %cst_10 {dimension_numbers = #tpu.dot_dimension_numbers<[1], [0], [0], [1], [0, 0, 1, 1], [], []>} : vector<16x128xbf16>, vector<128x128xbf16>, vector<16x128xf32> -> vector<16x128xf32>
    %12 = vector.broadcast %10 : vector<1x128xf32> to vector<16x128xf32>
    %13 = arith.addf %11, %12 : vector<16x128xf32>
    %14 = arith.truncf %13 : vector<16x128xf32> to vector<16x128xbf16>
    %cst_11 = arith.constant 0.000000e+00 : bf16
    %15 = vector.broadcast %cst_11 : bf16 to vector<16x128xbf16>
    %16 = arith.maximumf %14, %15 : vector<16x128xbf16>
    %c0_12 = arith.constant 0 : index
    %c0_13 = arith.constant 0 : index
    %17 = vector.load %arg6[%c0_12, %c0_13] : memref<128x128xbf16, #tpu.memory_space<vmem>>, vector<128x128xbf16>
    %c0_14 = arith.constant 0 : index
    %c0_15 = arith.constant 0 : index
    %18 = vector.load %arg7[%c0_14, %c0_15] : memref<1x128xf32, #tpu.memory_space<vmem>>, vector<1x128xf32>
    %cst_16 = arith.constant dense<0.000000e+00> : vector<16x128xf32>
    %19 = tpu.matmul %16, %17, %cst_16 {dimension_numbers = #tpu.dot_dimension_numbers<[1], [0], [0], [1], [0, 0, 1, 1], [], []>} : vector<16x128xbf16>, vector<128x128xbf16>, vector<16x128xf32> -> vector<16x128xf32>
    %20 = vector.broadcast %18 : vector<1x128xf32> to vector<16x128xf32>
    %21 = arith.addf %19, %20 : vector<16x128xf32>
    %c0_17 = arith.constant 0 : index
    %c0_18 = arith.constant 0 : index
    %22 = vector.load %arg8[%c0_17, %c0_18] : memref<16x128xf32, #tpu.memory_space<vmem>>, vector<16x128xf32>
    tpu.vector_store %arg8[%c0_17, %c0_18], %21 {strides = array<i32>} : memref<16x128xf32, #tpu.memory_space<vmem>>, vector<16x128xf32>,
    return
  }
  func.func @transform_0(%arg0: i32) -> (i32, i32) {
    %c0_i32 = arith.constant 0 : i32
    %c0_i32_0 = arith.constant 0 : i32
    return %arg0, %c0_i32 : i32, i32
  }
  func.func @transform_1(%arg0: i32) -> (i32, i32) {
    %c0_i32 = arith.constant 0 : i32
    %c0_i32_0 = arith.constant 0 : i32
    %c0_i32_1 = arith.constant 0 : i32
    return %c0_i32, %c0_i32_0 : i32, i32
  }
  func.func @transform_2(%arg0: i32) -> (i32, i32) {
    %c0_i32 = arith.constant 0 : i32
    %c0_i32_0 = arith.constant 0 : i32
    %c0_i32_1 = arith.constant 0 : i32
    return %c0_i32, %c0_i32_0 : i32, i32
  }
  func.func @transform_3(%arg0: i32) -> (i32, i32) {
    %c0_i32 = arith.constant 0 : i32
    %c0_i32_0 = arith.constant 0 : i32
    %c0_i32_1 = arith.constant 0 : i32
    return %c0_i32, %c0_i32_0 : i32, i32
  }
  func.func @transform_4(%arg0: i32) -> (i32, i32) {
    %c0_i32 = arith.constant 0 : i32
    %c0_i32_0 = arith.constant 0 : i32
    %c0_i32_1 = arith.constant 0 : i32
    return %c0_i32, %c0_i32_0 : i32, i32
  }
  func.func @transform_5(%arg0: i32) -> (i32, i32) {
    %c0_i32 = arith.constant 0 : i32
    %c0_i32_0 = arith.constant 0 : i32
    %c0_i32_1 = arith.constant 0 : i32
    return %c0_i32, %c0_i32_0 : i32, i32
  }
  func.func @transform_6(%arg0: i32) -> (i32, i32) {
    %c0_i32 = arith.constant 0 : i32
    %c0_i32_0 = arith.constant 0 : i32
    %c0_i32_1 = arith.constant 0 : i32
    return %c0_i32, %c0_i32_0 : i32, i32
  }
  func.func @transform_7(%arg0: i32) -> (i32, i32) {
    %c0_i32 = arith.constant 0 : i32
    %c0_i32_0 = arith.constant 0 : i32
    return %arg0, %c0_i32 : i32, i32
  }
}

module attributes {stable_mosaic.version = 11 : i64} {
  func.func @_fused_mlp_kernel(%arg0: i32, %arg1: memref<16x128xbf16, #tpu.memory_space<vmem>>, %arg2: memref<128x128xbf16, #tpu.memory_space<vmem>>, %arg3: memref<1x128xf32, #tpu.memory_space<vmem>>, %arg4: memref<128x128xbf16, #tpu.memory_space<vmem>>, %arg5: memref<1x128xf32, #tpu.memory_space<vmem>>, %arg6: memref<128x128xbf16, #tpu.memory_space<vmem>>, %arg7: memref<1x128xf32, #tpu.memory_space<vmem>>, %arg8: memref<16x128xf32, #tpu.memory_space<vmem>>) attributes {dimension_semantics = [#tpu.dimension_semantics<arbitrary>], iteration_bounds = array<i64: 1>, scalar_prefetch = 0 : i64, scratch_operands = 0 : i64, tpu.core_type = #tpu.core_type<tc>, window_params = [{transform_indices = @transform_0, window_bounds = array<i64: 16, 128>}, {pipeline_mode = #tpu.pipeline_mode<synchronous>, transform_indices = @transform_1, window_bounds = array<i64: 128, 128>}, {pipeline_mode = #tpu.pipeline_mode<synchronous>, transform_indices = @transform_2, window_bounds = array<i64: 1, 128>}, {pipeline_mode = #tpu.pipeline_mode<synchronous>, transform_indices = @transform_3, window_bounds = array<i64: 128, 128>}, {pipeline_mode = #tpu.pipeline_mode<synchronous>, transform_indices = @transform_4, window_bounds = array<i64: 1, 128>}, {pipeline_mode = #tpu.pipeline_mode<synchronous>, transform_indices = @transform_5, window_bounds = array<i64: 128, 128>}, {pipeline_mode = #tpu.pipeline_mode<synchronous>, transform_indices = @transform_6, window_bounds = array<i64: 1, 128>}, {transform_indices = @transform_7, window_bounds = array<i64: 16, 128>}]} {
    %c0 = arith.constant 0 : index
    %c0_0 = arith.constant 0 : index
    %0 = vector.load %arg1[%c0, %c0_0] : memref<16x128xbf16, #tpu.memory_space<vmem>>, vector<16x128xbf16>
    %c0_1 = arith.constant 0 : index
    %c0_2 = arith.constant 0 : index
    %1 = vector.load %arg2[%c0_1, %c0_2] : memref<128x128xbf16, #tpu.memory_space<vmem>>, vector<128x128xbf16>
    %c0_3 = arith.constant 0 : index
    %c0_4 = arith.constant 0 : index
    %2 = vector.load %arg3[%c0_3, %c0_4] : memref<1x128xf32, #tpu.memory_space<vmem>>, vector<1x128xf32>
    %cst = arith.constant dense<0.000000e+00> : vector<16x128xf32>
    %3 = tpu.matmul %0, %1, %cst {dimension_numbers = #tpu.dot_dimension_numbers<[1], [0], [0], [1], [0, 0, 1, 1], [], []>} : vector<16x128xbf16>, vector<128x128xbf16>, vector<16x128xf32> -> vector<16x128xf32>
    %4 = vector.broadcast %2 : vector<1x128xf32> to vector<16x128xf32>
    %5 = arith.addf %3, %4 : vector<16x128xf32>
    %6 = arith.truncf %5 : vector<16x128xf32> to vector<16x128xbf16>
    %cst_5 = arith.constant 0.000000e+00 : bf16
    %7 = vector.broadcast %cst_5 : bf16 to vector<16x128xbf16>
    %8 = arith.maximumf %6, %7 : vector<16x128xbf16>
    %c0_6 = arith.constant 0 : index
    %c0_7 = arith.constant 0 : index
    %9 = vector.load %arg4[%c0_6, %c0_7] : memref<128x128xbf16, #tpu.memory_space<vmem>>, vector<128x128xbf16>
    %c0_8 = arith.constant 0 : index
    %c0_9 = arith.constant 0 : index
    %10 = vector.load %arg5[%c0_8, %c0_9] : memref<1x128xf32, #tpu.memory_space<vmem>>, vector<1x128xf32>
    %cst_10 = arith.constant dense<0.000000e+00> : vector<16x128xf32>
    %11 = tpu.matmul %8, %9, %cst_10 {dimension_numbers = #tpu.dot_dimension_numbers<[1], [0], [0], [1], [0, 0, 1, 1], [], []>} : vector<16x128xbf16>, vector<128x128xbf16>, vector<16x128xf32> -> vector<16x128xf32>
    %12 = vector.broadcast %10 : vector<1x128xf32> to vector<16x128xf32>
    %13 = arith.addf %11, %12 : vector<16x128xf32>
    %14 = arith.truncf %13 : vector<16x128xf32> to vector<16x128xbf16>
    %cst_11 = arith.constant 0.000000e+00 : bf16
    %15 = vector.broadcast %cst_11 : bf16 to vector<16x128xbf16>
    %16 = arith.maximumf %14, %15 : vector<16x128xbf16>
    %c0_12 = arith.constant 0 : index
    %c0_13 = arith.constant 0 : index
    %17 = vector.load %arg6[%c0_12, %c0_13] : memref<128x128xbf16, #tpu.memory_space<vmem>>, vector<128x128xbf16>
    %c0_14 = arith.constant 0 : index
    %c0_15 = arith.constant 0 : index
    %18 = vector.load %arg7[%c0_14, %c0_15] : memref<1x128xf32, #tpu.memory_space<vmem>>, vector<1x128xf32>
    %cst_16 = arith.constant dense<0.000000e+00> : vector<16x128xf32>
    %19 = tpu.matmul %16, %17, %cst_16 {dimension_numbers = #tpu.dot_dimension_numbers<[1], [0], [0], [1], [0, 0, 1, 1], [], []>} : vector<16x128xbf16>, vector<128x128xbf16>, vector<16x128xf32> -> vector<16x128xf32>
    %20 = vector.broadcast %18 : vector<1x128xf32> to vector<16x128xf32>
    %21 = arith.addf %19, %20 : vector<16x128xf32>
    %c0_17 = arith.constant 0 : index
    %c0_18 = arith.constant 0 : index
    %22 = vector.load %arg8[%c0_17, %c0_18] : memref<16x128xf32, #tpu.memory_space<vmem>>, vector<16x128xf32>
    tpu.vector_store %arg8[%c0_17, %c0_18], %21 {strides = array<i32>} : memref<16x128xf32, #tpu.memory_space<vmem>>, vector<16x128xf32>,
    return
  }
  func.func @transform_0(%arg0: i32) -> (i32, i32) {
    %c0_i32 = arith.constant 0 : i32
    %c0_i32_0 = arith.constant 0 : i32
    return %arg0, %c0_i32 : i32, i32
  }
  func.func @transform_1(%arg0: i32) -> (i32, i32) {
    %c0_i32 = arith.constant 0 : i32
    %c0_i32_0 = arith.constant 0 : i32
    %c0_i32_1 = arith.constant 0 : i32
    return %c0_i32, %c0_i32_0 : i32, i32
  }
  func.func @transform_2(%arg0: i32) -> (i32, i32) {
    %c0_i32 = arith.constant 0 : i32
    %c0_i32_0 = arith.constant 0 : i32
    %c0_i32_1 = arith.constant 0 : i32
    return %c0_i32, %c0_i32_0 : i32, i32
  }
  func.func @transform_3(%arg0: i32) -> (i32, i32) {
    %c0_i32 = arith.constant 0 : i32
    %c0_i32_0 = arith.constant 0 : i32
    %c0_i32_1 = arith.constant 0 : i32
    return %c0_i32, %c0_i32_0 : i32, i32
  }
  func.func @transform_4(%arg0: i32) -> (i32, i32) {
    %c0_i32 = arith.constant 0 : i32
    %c0_i32_0 = arith.constant 0 : i32
    %c0_i32_1 = arith.constant 0 : i32
    return %c0_i32, %c0_i32_0 : i32, i32
  }
  func.func @transform_5(%arg0: i32) -> (i32, i32) {
    %c0_i32 = arith.constant 0 : i32
    %c0_i32_0 = arith.constant 0 : i32
    %c0_i32_1 = arith.constant 0 : i32
    return %c0_i32, %c0_i32_0 : i32, i32
  }
  func.func @transform_6(%arg0: i32) -> (i32, i32) {
    %c0_i32 = arith.constant 0 : i32
    %c0_i32_0 = arith.constant 0 : i32
    %c0_i32_1 = arith.constant 0 : i32
    return %c0_i32, %c0_i32_0 : i32, i32
  }
  func.func @transform_7(%arg0: i32) -> (i32, i32) {
    %c0_i32 = arith.constant 0 : i32
    %c0_i32_0 = arith.constant 0 : i32
    return %arg0, %c0_i32 : i32, i32
  }
}

module attributes {stable_mosaic.version = 11 : i64} {
  func.func @_linear_layer_kernel(%arg0: i32, %arg1: i32, %arg2: memref<16x128xbf16, #tpu.memory_space<vmem>>, %arg3: memref<128x128xbf16, #tpu.memory_space<vmem>>, %arg4: memref<1x128xf32, #tpu.memory_space<vmem>>, %arg5: memref<16x128xbf16, #tpu.memory_space<vmem>>) attributes {dimension_semantics = [#tpu.dimension_semantics<parallel>, #tpu.dimension_semantics<parallel>], iteration_bounds = array<i64: 1, 1>, scalar_prefetch = 0 : i64, scratch_operands = 0 : i64, tpu.core_type = #tpu.core_type<tc>, window_params = [{transform_indices = @transform_0, window_bounds = array<i64: 16, 128>}, {transform_indices = @transform_1, window_bounds = array<i64: 128, 128>}, {transform_indices = @transform_2, window_bounds = array<i64: 1, 128>}, {transform_indices = @transform_3, window_bounds = array<i64: 16, 128>}]} {
    %c0 = arith.constant 0 : index
    %c0_0 = arith.constant 0 : index
    %0 = vector.load %arg2[%c0, %c0_0] : memref<16x128xbf16, #tpu.memory_space<vmem>>, vector<16x128xbf16>
    %c0_1 = arith.constant 0 : index
    %c0_2 = arith.constant 0 : index
    %1 = vector.load %arg3[%c0_1, %c0_2] : memref<128x128xbf16, #tpu.memory_space<vmem>>, vector<128x128xbf16>
    %cst = arith.constant dense<0.000000e+00> : vector<16x128xf32>
    %2 = tpu.matmul %0, %1, %cst {dimension_numbers = #tpu.dot_dimension_numbers<[1], [0], [0], [1], [0, 0, 1, 1], [], []>} : vector<16x128xbf16>, vector<128x128xbf16>, vector<16x128xf32> -> vector<16x128xf32>
    %c0_3 = arith.constant 0 : index
    %c0_4 = arith.constant 0 : index
    %3 = vector.load %arg4[%c0_3, %c0_4] : memref<1x128xf32, #tpu.memory_space<vmem>>, vector<1x128xf32>
    %4 = vector.broadcast %3 : vector<1x128xf32> to vector<16x128xf32>
    %5 = arith.addf %2, %4 : vector<16x128xf32>
    %cst_5 = arith.constant 0.000000e+00 : f32
    %6 = vector.broadcast %cst_5 : f32 to vector<16x128xf32>
    %7 = arith.maximumf %5, %6 : vector<16x128xf32>
    %8 = arith.truncf %7 : vector<16x128xf32> to vector<16x128xbf16>
    %c0_6 = arith.constant 0 : index
    %c0_7 = arith.constant 0 : index
    %9 = vector.load %arg5[%c0_6, %c0_7] : memref<16x128xbf16, #tpu.memory_space<vmem>>, vector<16x128xbf16>
    tpu.vector_store %arg5[%c0_6, %c0_7], %8 {strides = array<i32>} : memref<16x128xbf16, #tpu.memory_space<vmem>>, vector<16x128xbf16>,
    return
  }
  func.func @transform_0(%arg0: i32, %arg1: i32) -> (i32, i32) {
    %c0_i32 = arith.constant 0 : i32
    %c0_i32_0 = arith.constant 0 : i32
    return %arg0, %c0_i32 : i32, i32
  }
  func.func @transform_1(%arg0: i32, %arg1: i32) -> (i32, i32) {
    %c0_i32 = arith.constant 0 : i32
    %c0_i32_0 = arith.constant 0 : i32
    return %c0_i32, %arg1 : i32, i32
  }
  func.func @transform_2(%arg0: i32, %arg1: i32) -> (i32, i32) {
    %c0_i32 = arith.constant 0 : i32
    %c0_i32_0 = arith.constant 0 : i32
    return %c0_i32, %arg1 : i32, i32
  }
  func.func @transform_3(%arg0: i32, %arg1: i32) -> (i32, i32) {
    %c0_i32 = arith.constant 0 : i32
    return %arg0, %arg1 : i32, i32
  }
}

</mosaic_0001>

<llo_original>
// kernel: tpu_custom_call.1
$region0: #{tpu_custom_call.1}
  #allocation0 [shape = 'u32[]', space=smem, size = 0x4, offset = 0x4, fixed_abs, tag = 'smem constant byte address 0x4 - core index']
  #allocation1 [shape = 'u32[144,128]{1,0:T(1,128)}', space=vmem, size = 0x12000, scoped, tag = 'internal scratch']
  %s0 = inlined_call_operand.hbm [shape: bf16[16,128], index: 0, kind: input, shape index: {}]
  %s1 = inlined_call_operand.hbm [shape: bf16[128,128], index: 1, kind: input, shape index: {}]
  %s2 = inlined_call_operand.vmem [shape: f32[1,128], index: 2, kind: input, shape index: {}]
  %s3 = inlined_call_operand.hbm [shape: bf16[128,128], index: 3, kind: input, shape index: {}]
  %s4 = inlined_call_operand.vmem [shape: f32[1,128], index: 4, kind: input, shape index: {}]
  %s5 = inlined_call_operand.hbm [shape: bf16[128,128], index: 5, kind: input, shape index: {}]
  %s6 = inlined_call_operand.vmem [shape: f32[1,128], index: 6, kind: input, shape index: {}]
  %s7 = inlined_call_operand.hbm [shape: f32[16,128], index: 7, kind: output, shape index: {}]
  %s8 = sld [smem:[#allocation0]]
  $region54: #{tpu_custom_call.1} parent=0
    _
  %s10 = ssub.s32 1, %s8
  %s11 = scalar_select 0, %s10, %s8
  $region1: #{tpu_custom_call.1} parent=0
    #allocation2 [shape = 'u8[4096]{0}', space=vmem, size = 0x1000, scoped, tag = 'input window, operand 0, single buffered']
    #allocation3 [shape = 's32[1]{0}', space=sflag, size = 0x4, scoped, tag = 'scoped memory for tpu_custom_call.1']
    #allocation4 [shape = 's32[1]{0}', space=sflag, size = 0x4, scoped, tag = 'scoped memory for tpu_custom_call.1']
    #allocation5 [shape = 'u8[32768]{0}', space=vmem, size = 0x8000, scoped, tag = 'input window, operand 1, single buffered']
    #allocation6 [shape = 's32[1]{0}', space=sflag, size = 0x4, scoped, tag = 'scoped memory for tpu_custom_call.1']
    #allocation7 [shape = 'u8[32768]{0}', space=vmem, size = 0x8000, scoped, tag = 'input window, operand 3, single buffered']
    #allocation8 [shape = 'u8[32768]{0}', space=vmem, size = 0x8000, scoped, tag = 'input window, operand 5, single buffered']
    #allocation9 [shape = 's32[1]{0}', space=sflag, size = 0x4, scoped, tag = 'scoped memory for tpu_custom_call.1']
    #allocation10 [shape = 'u8[8192]{0}', space=vmem, size = 0x2000, scoped, tag = 'output window, operand 0, single buffered']
    %12 = vsyncpa [#allocation3], 0
    %13 = vsyncpa [#allocation6], 0
    %14 = vsyncpa [#allocation9], 0
    %15 = vsyncpa [#allocation4], 0
    // Predicated region
    $region2: #{tpu_custom_call.1} parent=1 // pred_check
      _
    $region3: #{tpu_custom_call.1} parent=1 // pred_check_branch
      %17 = sbr.rel (0) target = $region5
    $region4: #{tpu_custom_call.1} parent=1 // pred_region
      %s19 = ssub.s32 128, 128
      %20 = vsyncadd [#allocation3], %s19
      %s21 = sshll.u32 [#allocation2], 4
      %s22 = int_to_ptr.vmem [resolvable:$true] %s21
      %27 = dma.hbm_to_vmem [thread:$0]  %s0, 128, %s22, [#allocation3], 64, 64, 4
    $region5: #{tpu_custom_call.1} parent=1 // pred_fallthru
      _
    // Predicated region
    $region6: #{tpu_custom_call.1} parent=1 // pred_check
      _
    $region7: #{tpu_custom_call.1} parent=1 // pred_check_branch
      %29 = sbr.rel (0) target = $region9
    $region8: #{tpu_custom_call.1} parent=1 // pred_region
      %s31 = ssub.s32 1024, 1024
      %32 = vsyncadd [#allocation6], %s31
      %s33 = sshll.u32 [#allocation5], 4
      %s34 = int_to_ptr.vmem [resolvable:$true] %s33
      %39 = dma.hbm_to_vmem [thread:$0]  %s1, 1024, %s34, [#allocation6], 64, 64, 4
    $region9: #{tpu_custom_call.1} parent=1 // pred_fallthru
      _
    // Predicated region
    $region10: #{tpu_custom_call.1} parent=1 // pred_check
      _
    $region11: #{tpu_custom_call.1} parent=1 // pred_check_branch
      %41 = sbr.rel (0) target = $region13
    $region12: #{tpu_custom_call.1} parent=1 // pred_region
      _
    $region13: #{tpu_custom_call.1} parent=1 // pred_fallthru
      _
    // Predicated region
    $region14: #{tpu_custom_call.1} parent=1 // pred_check
      _
    $region15: #{tpu_custom_call.1} parent=1 // pred_check_branch
      %43 = sbr.rel (0) target = $region17
    $region16: #{tpu_custom_call.1} parent=1 // pred_region
      %s45 = ssub.s32 1024, 1024
      %46 = vsyncadd [#allocation6], %s45
      %s47 = sshll.u32 [#allocation7], 4
      %s48 = int_to_ptr.vmem [resolvable:$true] %s47
      %53 = dma.hbm_to_vmem [thread:$0]  %s3, 1024, %s48, [#allocation6], 64, 64, 4
    $region17: #{tpu_custom_call.1} parent=1 // pred_fallthru
      _
    // Predicated region
    $region18: #{tpu_custom_call.1} parent=1 // pred_check
      _
    $region19: #{tpu_custom_call.1} parent=1 // pred_check_branch
      %55 = sbr.rel (0) target = $region21
    $region20: #{tpu_custom_call.1} parent=1 // pred_region
      _
    $region21: #{tpu_custom_call.1} parent=1 // pred_fallthru
      _
    // Predicated region
    $region22: #{tpu_custom_call.1} parent=1 // pred_check
      _
    $region23: #{tpu_custom_call.1} parent=1 // pred_check_branch
      %57 = sbr.rel (0) target = $region25
    $region24: #{tpu_custom_call.1} parent=1 // pred_region
      %s59 = ssub.s32 1024, 1024
      %60 = vsyncadd [#allocation9], %s59
      %s61 = sshll.u32 [#allocation8], 4
      %s62 = int_to_ptr.vmem [resolvable:$true] %s61
      %67 = dma.hbm_to_vmem [thread:$0]  %s5, 1024, %s62, [#allocation9], 64, 64, 4
    $region25: #{tpu_custom_call.1} parent=1 // pred_fallthru
      _
    // Predicated region
    $region26: #{tpu_custom_call.1} parent=1 // pred_check
      _
    $region27: #{tpu_custom_call.1} parent=1 // pred_check_branch
      %69 = sbr.rel (0) target = $region29
    $region28: #{tpu_custom_call.1} parent=1 // pred_region
      _
    $region29: #{tpu_custom_call.1} parent=1 // pred_fallthru
      _
    // Predicated region
    $region30: #{tpu_custom_call.1} parent=1 // pred_check
      _
    $region31: #{tpu_custom_call.1} parent=1 // pred_check_branch
      %71 = sbr.rel (0) target = $region33
    $region32: #{tpu_custom_call.1} parent=1 // pred_region
      %72 = dma.done [#allocation3], 128
    $region33: #{tpu_custom_call.1} parent=1 // pred_fallthru
      _
    // Predicated region
    $region34: #{tpu_custom_call.1} parent=1 // pred_check
      _
    $region35: #{tpu_custom_call.1} parent=1 // pred_check_branch
      %74 = sbr.rel (0) target = $region37
    $region36: #{tpu_custom_call.1} parent=1 // pred_region
      %75 = dma.done [#allocation6], 1024
    $region37: #{tpu_custom_call.1} parent=1 // pred_fallthru
      _
    // Predicated region
    $region38: #{tpu_custom_call.1} parent=1 // pred_check
      _
    $region39: #{tpu_custom_call.1} parent=1 // pred_check_branch
      %77 = sbr.rel (0) target = $region41
    $region40: #{tpu_custom_call.1} parent=1 // pred_region
      %78 = dma.done [#allocation6], 1024
    $region41: #{tpu_custom_call.1} parent=1 // pred_fallthru
      _
    // Predicated region
    $region42: #{tpu_custom_call.1} parent=1 // pred_check
      _
    $region43: #{tpu_custom_call.1} parent=1 // pred_check_branch
      %80 = sbr.rel (0) target = $region45
    $region44: #{tpu_custom_call.1} parent=1 // pred_region
      %81 = dma.done [#allocation9], 1024
    $region45: #{tpu_custom_call.1} parent=1 // pred_fallthru
      _
    %v83 = vld [vmem:[#allocation2] sm:$0xf]
    %v84 = vld [vmem:[#allocation2 + $0x4] sm:$0xf]
    %v85 = vld [vmem:[#allocation5] sm:$0xf]
    %v86 = vld [vmem:[#allocation5 + $0x4] sm:$0xf]
    %v87 = vld [vmem:[#allocation5 + $0x8] sm:$0xf]
    %v88 = vld [vmem:[#allocation5 + $0xc] sm:$0xf]
    %v89 = vld [vmem:[#allocation5 + $0x10] sm:$0xf]
    %v90 = vld [vmem:[#allocation5 + $0x14] sm:$0xf]
    %v91 = vld [vmem:[#allocation5 + $0x18] sm:$0xf]
    %v92 = vld [vmem:[#allocation5 + $0x1c] sm:$0xf]
    %v93 = vld [vmem:[#allocation5 + $0x20] sm:$0xf]
    %v94 = vld [vmem:[#allocation5 + $0x24] sm:$0xf]
    %v95 = vld [vmem:[#allocation5 + $0x28] sm:$0xf]
    %v96 = vld [vmem:[#allocation5 + $0x2c] sm:$0xf]
    %v97 = vld [vmem:[#allocation5 + $0x30] sm:$0xf]
    %v98 = vld [vmem:[#allocation5 + $0x34] sm:$0xf]
    %v99 = vld [vmem:[#allocation5 + $0x38] sm:$0xf]
    %v100 = vld [vmem:[#allocation5 + $0x3c] sm:$0xf]
    %v101 = vld [vmem:[%s2] sm:$0x1]
    %v103 = vlaneseq
    %v104 = vshrl.u32 %v103, 7
    %v105 = vsub.s32 0, %v104
    %v106 = vrot.slane %v101, %v105
    %v110 = vunpack.c.l.b16 %v83
    %v111 = vunpack.c.l.b16 %v84
    %v112 = vpack.c.b16 %v111, %v110
    %v130 = vunpack.c.l.b16 %v85
    %v131 = vunpack.c.l.b16 %v86
    %v132 = vunpack.c.l.b16 %v87
    %v133 = vunpack.c.l.b16 %v88
    %v134 = vunpack.c.l.b16 %v89
    %v135 = vunpack.c.l.b16 %v90
    %v136 = vunpack.c.l.b16 %v91
    %v137 = vunpack.c.l.b16 %v92
    %v138 = vunpack.c.l.b16 %v93
    %v139 = vunpack.c.l.b16 %v94
    %v140 = vunpack.c.l.b16 %v95
    %v141 = vunpack.c.l.b16 %v96
    %v142 = vunpack.c.l.b16 %v97
    %v143 = vunpack.c.l.b16 %v98
    %v144 = vunpack.c.l.b16 %v99
    %v145 = vunpack.c.l.b16 %v100
    %v146 = vpack.c.b16 %v131, %v130
    %v147 = vpack.c.b16 %v133, %v132
    %v148 = vpack.c.b16 %v135, %v134
    %v149 = vpack.c.b16 %v137, %v136
    %v150 = vpack.c.b16 %v139, %v138
    %v151 = vpack.c.b16 %v141, %v140
    %v152 = vpack.c.b16 %v143, %v142
    %v153 = vpack.c.b16 %v145, %v144
    %162 = vmatprep.subr.bf16.mxu0 0
    %163 = vmatpush1.bf16.msra.mxu0 %v146
    %164 = vmatprep.subr.bf16.mxu0 0
    %165 = vmatpush1.bf16.msra.mxu0 %v147
    %166 = vmatprep.subr.bf16.mxu0 0
    %167 = vmatpush1.bf16.msra.mxu0 %v148
    %168 = vmatprep.subr.bf16.mxu0 0
    %169 = vmatpush1.bf16.msra.mxu0 %v149
    %170 = vmatprep.subr.bf16.mxu0 0
    %171 = vmatpush1.bf16.msra.mxu0 %v150
    %172 = vmatprep.subr.bf16.mxu0 0
    %173 = vmatpush1.bf16.msra.mxu0 %v151
    %174 = vmatprep.subr.bf16.mxu0 0
    %175 = vmatpush1.bf16.msra.mxu0 %v152
    %176 = vmatprep.subr.bf16.mxu0 0
    %177 = vmatpush1.bf16.msra.mxu0 %v153
    %178 = vmatprep.subr.bf16.mxu0 0
    %179 = vmatpush1.bf16.msra.mxu0 0
    %180 = vmatprep.subr.bf16.mxu0 0
    %181 = vmatpush1.bf16.msra.mxu0 0
    %182 = vmatprep.subr.bf16.mxu0 0
    %183 = vmatpush1.bf16.msra.mxu0 0
    %184 = vmatprep.subr.bf16.mxu0 0
    %185 = vmatpush1.bf16.msra.mxu0 0
    %186 = vmatprep.subr.bf16.mxu0 0
    %187 = vmatpush1.bf16.msra.mxu0 0
    %188 = vmatprep.subr.bf16.mxu0 0
    %189 = vmatpush1.bf16.msra.mxu0 0
    %190 = vmatprep.subr.bf16.mxu0 0
    %191 = vmatpush1.bf16.msra.mxu0 0
    %192 = vmatprep.subr.bf16.mxu0 0
    %193 = vmatpush1.bf16.msra.mxu0 0
    %194 = vmatprep.mubr.bf16.mxu0 0
    %195 = vmatmul.mubr.bf16.gmra.mrb[0].mxu0 %v112
    %v196 = vpop.f32.mrb[0].mxu0
    %v197 = vadd.f32 %v106, %v196
    %v198 = vpop.f32.mrb[0].mxu0
    %v199 = vpop.f32.mrb[0].mxu0
    %v200 = vadd.f32 %v106, %v199
    %v201 = vpop.f32.mrb[0].mxu0
    %202 = vdwg.mxu0
    %v203 = vpack.c.bf16 %v200, %v197
    %v204 = vmax.bf16 %v203, 0
    %v205 = vld [vmem:[#allocation7] sm:$0xf]
    %v206 = vld [vmem:[#allocation7 + $0x4] sm:$0xf]
    %v207 = vld [vmem:[#allocation7 + $0x8] sm:$0xf]
    %v208 = vld [vmem:[#allocation7 + $0xc] sm:$0xf]
    %v209 = vld [vmem:[#allocation7 + $0x10] sm:$0xf]
    %v210 = vld [vmem:[#allocation7 + $0x14] sm:$0xf]
    %v211 = vld [vmem:[#allocation7 + $0x18] sm:$0xf]
    %v212 = vld [vmem:[#allocation7 + $0x1c] sm:$0xf]
    %v213 = vld [vmem:[#allocation7 + $0x20] sm:$0xf]
    %v214 = vld [vmem:[#allocation7 + $0x24] sm:$0xf]
    %v215 = vld [vmem:[#allocation7 + $0x28] sm:$0xf]
    %v216 = vld [vmem:[#allocation7 + $0x2c] sm:$0xf]
    %v217 = vld [vmem:[#allocation7 + $0x30] sm:$0xf]
    %v218 = vld [vmem:[#allocation7 + $0x34] sm:$0xf]
    %v219 = vld [vmem:[#allocation7 + $0x38] sm:$0xf]
    %v220 = vld [vmem:[#allocation7 + $0x3c] sm:$0xf]
    %v221 = vld [vmem:[%s4] sm:$0x1]
    %v223 = vlaneseq
    %v224 = vshrl.u32 %v223, 7
    %v225 = vsub.s32 0, %v224
    %v226 = vrot.slane %v221, %v225
    %v244 = vunpack.c.l.b16 %v205
    %v245 = vunpack.c.l.b16 %v206
    %v246 = vunpack.c.l.b16 %v207
    %v247 = vunpack.c.l.b16 %v208
    %v248 = vunpack.c.l.b16 %v209
    %v249 = vunpack.c.l.b16 %v210
    %v250 = vunpack.c.l.b16 %v211
    %v251 = vunpack.c.l.b16 %v212
    %v252 = vunpack.c.l.b16 %v213
    %v253 = vunpack.c.l.b16 %v214
    %v254 = vunpack.c.l.b16 %v215
    %v255 = vunpack.c.l.b16 %v216
    %v256 = vunpack.c.l.b16 %v217
    %v257 = vunpack.c.l.b16 %v218
    %v258 = vunpack.c.l.b16 %v219
    %v259 = vunpack.c.l.b16 %v220
    %v260 = vpack.c.b16 %v245, %v244
    %v261 = vpack.c.b16 %v247, %v246
    %v262 = vpack.c.b16 %v249, %v248
    %v263 = vpack.c.b16 %v251, %v250
    %v264 = vpack.c.b16 %v253, %v252
    %v265 = vpack.c.b16 %v255, %v254
    %v266 = vpack.c.b16 %v257, %v256
    %v267 = vpack.c.b16 %v259, %v258
    %276 = vmatprep.subr.bf16.mxu0 0
    %277 = vmatpush1.bf16.msra.mxu0 %v260
    %278 = vmatprep.subr.bf16.mxu0 0
    %279 = vmatpush1.bf16.msra.mxu0 %v261
    %280 = vmatprep.subr.bf16.mxu0 0
    %281 = vmatpush1.bf16.msra.mxu0 %v262
    %282 = vmatprep.subr.bf16.mxu0 0
    %283 = vmatpush1.bf16.msra.mxu0 %v263
    %284 = vmatprep.subr.bf16.mxu0 0
    %285 = vmatpush1.bf16.msra.mxu0 %v264
    %286 = vmatprep.subr.bf16.mxu0 0
    %287 = vmatpush1.bf16.msra.mxu0 %v265
    %288 = vmatprep.subr.bf16.mxu0 0
    %289 = vmatpush1.bf16.msra.mxu0 %v266
    %290 = vmatprep.subr.bf16.mxu0 0
    %291 = vmatpush1.bf16.msra.mxu0 %v267
    %292 = vmatprep.subr.bf16.mxu0 0
    %293 = vmatpush1.bf16.msra.mxu0 0
    %294 = vmatprep.subr.bf16.mxu0 0
    %295 = vmatpush1.bf16.msra.mxu0 0
    %296 = vmatprep.subr.bf16.mxu0 0
    %297 = vmatpush1.bf16.msra.mxu0 0
    %298 = vmatprep.subr.bf16.mxu0 0
    %299 = vmatpush1.bf16.msra.mxu0 0
    %300 = vmatprep.subr.bf16.mxu0 0
    %301 = vmatpush1.bf16.msra.mxu0 0
    %302 = vmatprep.subr.bf16.mxu0 0
    %303 = vmatpush1.bf16.msra.mxu0 0
    %304 = vmatprep.subr.bf16.mxu0 0
    %305 = vmatpush1.bf16.msra.mxu0 0
    %306 = vmatprep.subr.bf16.mxu0 0
    %307 = vmatpush1.bf16.msra.mxu0 0
    %308 = vmatprep.mubr.bf16.mxu0 0
    %309 = vmatmul.mubr.bf16.gmra.mrb[0].mxu0 %v204
    %v310 = vpop.f32.mrb[0].mxu0
    %v311 = vadd.f32 %v226, %v310
    %v312 = vpop.f32.mrb[0].mxu0
    %v313 = vpop.f32.mrb[0].mxu0
    %v314 = vadd.f32 %v226, %v313
    %v315 = vpop.f32.mrb[0].mxu0
    %316 = vdwg.mxu0
    %v317 = vpack.c.bf16 %v314, %v311
    %v318 = vmax.bf16 %v317, 0
    %v319 = vld [vmem:[#allocation8] sm:$0xf]
    %v320 = vld [vmem:[#allocation8 + $0x4] sm:$0xf]
    %v321 = vld [vmem:[#allocation8 + $0x8] sm:$0xf]
    %v322 = vld [vmem:[#allocation8 + $0xc] sm:$0xf]
    %v323 = vld [vmem:[#allocation8 + $0x10] sm:$0xf]
    %v324 = vld [vmem:[#allocation8 + $0x14] sm:$0xf]
    %v325 = vld [vmem:[#allocation8 + $0x18] sm:$0xf]
    %v326 = vld [vmem:[#allocation8 + $0x1c] sm:$0xf]
    %v327 = vld [vmem:[#allocation8 + $0x20] sm:$0xf]
    %v328 = vld [vmem:[#allocation8 + $0x24] sm:$0xf]
    %v329 = vld [vmem:[#allocation8 + $0x28] sm:$0xf]
    %v330 = vld [vmem:[#allocation8 + $0x2c] sm:$0xf]
    %v331 = vld [vmem:[#allocation8 + $0x30] sm:$0xf]
    %v332 = vld [vmem:[#allocation8 + $0x34] sm:$0xf]
    %v333 = vld [vmem:[#allocation8 + $0x38] sm:$0xf]
    %v334 = vld [vmem:[#allocation8 + $0x3c] sm:$0xf]
    %v335 = vld [vmem:[%s6] sm:$0x1]
    %v337 = vlaneseq
    %v338 = vshrl.u32 %v337, 7
    %v339 = vsub.s32 0, %v338
    %v340 = vrot.slane %v335, %v339
    %v358 = vunpack.c.l.b16 %v319
    %v359 = vunpack.c.l.b16 %v320
    %v360 = vunpack.c.l.b16 %v321
    %v361 = vunpack.c.l.b16 %v322
    %v362 = vunpack.c.l.b16 %v323
    %v363 = vunpack.c.l.b16 %v324
    %v364 = vunpack.c.l.b16 %v325
    %v365 = vunpack.c.l.b16 %v326
    %v366 = vunpack.c.l.b16 %v327
    %v367 = vunpack.c.l.b16 %v328
    %v368 = vunpack.c.l.b16 %v329
    %v369 = vunpack.c.l.b16 %v330
    %v370 = vunpack.c.l.b16 %v331
    %v371 = vunpack.c.l.b16 %v332
    %v372 = vunpack.c.l.b16 %v333
    %v373 = vunpack.c.l.b16 %v334
    %v374 = vpack.c.b16 %v359, %v358
    %v375 = vpack.c.b16 %v361, %v360
    %v376 = vpack.c.b16 %v363, %v362
    %v377 = vpack.c.b16 %v365, %v364
    %v378 = vpack.c.b16 %v367, %v366
    %v379 = vpack.c.b16 %v369, %v368
    %v380 = vpack.c.b16 %v371, %v370
    %v381 = vpack.c.b16 %v373, %v372
    %390 = vmatprep.subr.bf16.mxu0 0
    %391 = vmatpush1.bf16.msra.mxu0 %v374
    %392 = vmatprep.subr.bf16.mxu0 0
    %393 = vmatpush1.bf16.msra.mxu0 %v375
    %394 = vmatprep.subr.bf16.mxu0 0
    %395 = vmatpush1.bf16.msra.mxu0 %v376
    %396 = vmatprep.subr.bf16.mxu0 0
    %397 = vmatpush1.bf16.msra.mxu0 %v377
    %398 = vmatprep.subr.bf16.mxu0 0
    %399 = vmatpush1.bf16.msra.mxu0 %v378
    %400 = vmatprep.subr.bf16.mxu0 0
    %401 = vmatpush1.bf16.msra.mxu0 %v379
    %402 = vmatprep.subr.bf16.mxu0 0
    %403 = vmatpush1.bf16.msra.mxu0 %v380
    %404 = vmatprep.subr.bf16.mxu0 0
    %405 = vmatpush1.bf16.msra.mxu0 %v381
    %406 = vmatprep.subr.bf16.mxu0 0
    %407 = vmatpush1.bf16.msra.mxu0 0
    %408 = vmatprep.subr.bf16.mxu0 0
    %409 = vmatpush1.bf16.msra.mxu0 0
    %410 = vmatprep.subr.bf16.mxu0 0
    %411 = vmatpush1.bf16.msra.mxu0 0
    %412 = vmatprep.subr.bf16.mxu0 0
    %413 = vmatpush1.bf16.msra.mxu0 0
    %414 = vmatprep.subr.bf16.mxu0 0
    %415 = vmatpush1.bf16.msra.mxu0 0
    %416 = vmatprep.subr.bf16.mxu0 0
    %417 = vmatpush1.bf16.msra.mxu0 0
    %418 = vmatprep.subr.bf16.mxu0 0
    %419 = vmatpush1.bf16.msra.mxu0 0
    %420 = vmatprep.subr.bf16.mxu0 0
    %421 = vmatpush1.bf16.msra.mxu0 0
    %422 = vmatprep.mubr.bf16.mxu0 0
    %423 = vmatmul.mubr.bf16.gmra.mrb[0].mxu0 %v318
    %v424 = vpop.f32.mrb[0].mxu0
    %v425 = vadd.f32 %v340, %v424
    %v426 = vpop.f32.mrb[0].mxu0
    %v427 = vpop.f32.mrb[0].mxu0
    %v428 = vadd.f32 %v340, %v427
    %v429 = vpop.f32.mrb[0].mxu0
    %430 = vdwg.mxu0
    %431 = vst [vmem:[#allocation10] sm:$0xff] %v425
    %432 = vst [vmem:[#allocation10 + $0x8] sm:$0xff] %v428
    // Predicated region
    $region46: #{tpu_custom_call.1} parent=1 // pred_check
      _
    $region47: #{tpu_custom_call.1} parent=1 // pred_check_branch
      %434 = sbr.rel (0) target = $region49
    $region48: #{tpu_custom_call.1} parent=1 // pred_region
      %s436 = ssub.s32 256, 256
      %437 = vsyncadd [#allocation4], %s436
      %s438 = sshll.u32 [#allocation10], 4
      %s439 = int_to_ptr.vmem [resolvable:$true] %s438
      %444 = dma.vmem_to_hbm [thread:$0]  %s439, 256, %s7, [#allocation4], 128, 128, 8
    $region49: #{tpu_custom_call.1} parent=1 // pred_fallthru
      _
    // Predicated region
    $region50: #{tpu_custom_call.1} parent=1 // pred_check
      _
    $region51: #{tpu_custom_call.1} parent=1 // pred_check_branch
      %446 = sbr.rel (0) target = $region53
    $region52: #{tpu_custom_call.1} parent=1 // pred_region
      %447 = dma.done [#allocation4], 256
    $region53: #{tpu_custom_call.1} parent=1 // pred_fallthru
      _
    %448 = vsyncpa [#allocation3], 1
    %449 = vsyncpa [#allocation6], 1
    %450 = vsyncpa [#allocation9], 1
    %451 = vsyncpa [#allocation4], 1

// kernel: tpu_custom_call.1
$region0: #{tpu_custom_call.1}
  #allocation0 [shape = 'u32[]', space=smem, size = 0x4, offset = 0x4, fixed_abs, tag = 'smem constant byte address 0x4 - core index']
  #allocation1 [shape = 'u32[144,128]{1,0:T(1,128)}', space=vmem, size = 0x12000, scoped, tag = 'internal scratch']
  %s0 = inlined_call_operand.hbm [shape: bf16[16,128], index: 0, kind: input, shape index: {}]
  %s1 = inlined_call_operand.hbm [shape: bf16[128,128], index: 1, kind: input, shape index: {}]
  %s2 = inlined_call_operand.vmem [shape: f32[1,128], index: 2, kind: input, shape index: {}]
  %s3 = inlined_call_operand.hbm [shape: bf16[128,128], index: 3, kind: input, shape index: {}]
  %s4 = inlined_call_operand.vmem [shape: f32[1,128], index: 4, kind: input, shape index: {}]
  %s5 = inlined_call_operand.hbm [shape: bf16[128,128], index: 5, kind: input, shape index: {}]
  %s6 = inlined_call_operand.vmem [shape: f32[1,128], index: 6, kind: input, shape index: {}]
  %s7 = inlined_call_operand.hbm [shape: f32[16,128], index: 7, kind: output, shape index: {}]
  %s8 = sld [smem:[#allocation0]]
  $region54: #{tpu_custom_call.1} parent=0
    _
  %s10 = ssub.s32 1, %s8
  %s11 = scalar_select 0, %s10, %s8
  $region1: #{tpu_custom_call.1} parent=0
    #allocation2 [shape = 'u8[4096]{0}', space=vmem, size = 0x1000, scoped, tag = 'input window, operand 0, single buffered']
    #allocation3 [shape = 's32[1]{0}', space=sflag, size = 0x4, scoped, tag = 'scoped memory for tpu_custom_call.1']
    #allocation4 [shape = 's32[1]{0}', space=sflag, size = 0x4, scoped, tag = 'scoped memory for tpu_custom_call.1']
    #allocation5 [shape = 'u8[32768]{0}', space=vmem, size = 0x8000, scoped, tag = 'input window, operand 1, single buffered']
    #allocation6 [shape = 's32[1]{0}', space=sflag, size = 0x4, scoped, tag = 'scoped memory for tpu_custom_call.1']
    #allocation7 [shape = 'u8[32768]{0}', space=vmem, size = 0x8000, scoped, tag = 'input window, operand 3, single buffered']
    #allocation8 [shape = 'u8[32768]{0}', space=vmem, size = 0x8000, scoped, tag = 'input window, operand 5, single buffered']
    #allocation9 [shape = 's32[1]{0}', space=sflag, size = 0x4, scoped, tag = 'scoped memory for tpu_custom_call.1']
    #allocation10 [shape = 'u8[8192]{0}', space=vmem, size = 0x2000, scoped, tag = 'output window, operand 0, single buffered']
    %12 = vsyncpa [#allocation3], 0
    %13 = vsyncpa [#allocation6], 0
    %14 = vsyncpa [#allocation9], 0
    %15 = vsyncpa [#allocation4], 0
    // Predicated region
    $region2: #{tpu_custom_call.1} parent=1 // pred_check
      _
    $region3: #{tpu_custom_call.1} parent=1 // pred_check_branch
      %17 = sbr.rel (0) target = $region5
    $region4: #{tpu_custom_call.1} parent=1 // pred_region
      %s19 = ssub.s32 128, 128
      %20 = vsyncadd [#allocation3], %s19
      %s21 = sshll.u32 [#allocation2], 4
      %s22 = int_to_ptr.vmem [resolvable:$true] %s21
      %27 = dma.hbm_to_vmem [thread:$0]  %s0, 128, %s22, [#allocation3], 64, 64, 4
    $region5: #{tpu_custom_call.1} parent=1 // pred_fallthru
      _
    // Predicated region
    $region6: #{tpu_custom_call.1} parent=1 // pred_check
      _
    $region7: #{tpu_custom_call.1} parent=1 // pred_check_branch
      %29 = sbr.rel (0) target = $region9
    $region8: #{tpu_custom_call.1} parent=1 // pred_region
      %s31 = ssub.s32 1024, 1024
      %32 = vsyncadd [#allocation6], %s31
      %s33 = sshll.u32 [#allocation5], 4
      %s34 = int_to_ptr.vmem [resolvable:$true] %s33
      %39 = dma.hbm_to_vmem [thread:$0]  %s1, 1024, %s34, [#allocation6], 64, 64, 4
    $region9: #{tpu_custom_call.1} parent=1 // pred_fallthru
      _
    // Predicated region
    $region10: #{tpu_custom_call.1} parent=1 // pred_check
      _
    $region11: #{tpu_custom_call.1} parent=1 // pred_check_branch
      %41 = sbr.rel (0) target = $region13
    $region12: #{tpu_custom_call.1} parent=1 // pred_region
      _
    $region13: #{tpu_custom_call.1} parent=1 // pred_fallthru
      _
    // Predicated region
    $region14: #{tpu_custom_call.1} parent=1 // pred_check
      _
    $region15: #{tpu_custom_call.1} parent=1 // pred_check_branch
      %43 = sbr.rel (0) target = $region17
    $region16: #{tpu_custom_call.1} parent=1 // pred_region
      %s45 = ssub.s32 1024, 1024
      %46 = vsyncadd [#allocation6], %s45
      %s47 = sshll.u32 [#allocation7], 4
      %s48 = int_to_ptr.vmem [resolvable:$true] %s47
      %53 = dma.hbm_to_vmem [thread:$0]  %s3, 1024, %s48, [#allocation6], 64, 64, 4
    $region17: #{tpu_custom_call.1} parent=1 // pred_fallthru
      _
    // Predicated region
    $region18: #{tpu_custom_call.1} parent=1 // pred_check
      _
    $region19: #{tpu_custom_call.1} parent=1 // pred_check_branch
      %55 = sbr.rel (0) target = $region21
    $region20: #{tpu_custom_call.1} parent=1 // pred_region
      _
    $region21: #{tpu_custom_call.1} parent=1 // pred_fallthru
      _
    // Predicated region
    $region22: #{tpu_custom_call.1} parent=1 // pred_check
      _
    $region23: #{tpu_custom_call.1} parent=1 // pred_check_branch
      %57 = sbr.rel (0) target = $region25
    $region24: #{tpu_custom_call.1} parent=1 // pred_region
      %s59 = ssub.s32 1024, 1024
      %60 = vsyncadd [#allocation9], %s59
      %s61 = sshll.u32 [#allocation8], 4
      %s62 = int_to_ptr.vmem [resolvable:$true] %s61
      %67 = dma.hbm_to_vmem [thread:$0]  %s5, 1024, %s62, [#allocation9], 64, 64, 4
    $region25: #{tpu_custom_call.1} parent=1 // pred_fallthru
      _
    // Predicated region
    $region26: #{tpu_custom_call.1} parent=1 // pred_check
      _
    $region27: #{tpu_custom_call.1} parent=1 // pred_check_branch
      %69 = sbr.rel (0) target = $region29
    $region28: #{tpu_custom_call.1} parent=1 // pred_region
      _
    $region29: #{tpu_custom_call.1} parent=1 // pred_fallthru
      _
    // Predicated region
    $region30: #{tpu_custom_call.1} parent=1 // pred_check
      _
    $region31: #{tpu_custom_call.1} parent=1 // pred_check_branch
      %71 = sbr.rel (0) target = $region33
    $region32: #{tpu_custom_call.1} parent=1 // pred_region
      %72 = dma.done [#allocation3], 128
    $region33: #{tpu_custom_call.1} parent=1 // pred_fallthru
      _
    // Predicated region
    $region34: #{tpu_custom_call.1} parent=1 // pred_check
      _
    $region35: #{tpu_custom_call.1} parent=1 // pred_check_branch
      %74 = sbr.rel (0) target = $region37
    $region36: #{tpu_custom_call.1} parent=1 // pred_region
      %75 = dma.done [#allocation6], 1024
    $region37: #{tpu_custom_call.1} parent=1 // pred_fallthru
      _
    // Predicated region
    $region38: #{tpu_custom_call.1} parent=1 // pred_check
      _
    $region39: #{tpu_custom_call.1} parent=1 // pred_check_branch
      %77 = sbr.rel (0) target = $region41
    $region40: #{tpu_custom_call.1} parent=1 // pred_region
      %78 = dma.done [#allocation6], 1024
    $region41: #{tpu_custom_call.1} parent=1 // pred_fallthru
      _
    // Predicated region
    $region42: #{tpu_custom_call.1} parent=1 // pred_check
      _
    $region43: #{tpu_custom_call.1} parent=1 // pred_check_branch
      %80 = sbr.rel (0) target = $region45
    $region44: #{tpu_custom_call.1} parent=1 // pred_region
      %81 = dma.done [#allocation9], 1024
    $region45: #{tpu_custom_call.1} parent=1 // pred_fallthru
      _
    %v83 = vld [vmem:[#allocation2] sm:$0xf]
    %v84 = vld [vmem:[#allocation2 + $0x4] sm:$0xf]
    %v85 = vld [vmem:[#allocation5] sm:$0xf]
    %v86 = vld [vmem:[#allocation5 + $0x4] sm:$0xf]
    %v87 = vld [vmem:[#allocation5 + $0x8] sm:$0xf]
    %v88 = vld [vmem:[#allocation5 + $0xc] sm:$0xf]
    %v89 = vld [vmem:[#allocation5 + $0x10] sm:$0xf]
    %v90 = vld [vmem:[#allocation5 + $0x14] sm:$0xf]
    %v91 = vld [vmem:[#allocation5 + $0x18] sm:$0xf]
    %v92 = vld [vmem:[#allocation5 + $0x1c] sm:$0xf]
    %v93 = vld [vmem:[#allocation5 + $0x20] sm:$0xf]
    %v94 = vld [vmem:[#allocation5 + $0x24] sm:$0xf]
    %v95 = vld [vmem:[#allocation5 + $0x28] sm:$0xf]
    %v96 = vld [vmem:[#allocation5 + $0x2c] sm:$0xf]
    %v97 = vld [vmem:[#allocation5 + $0x30] sm:$0xf]
    %v98 = vld [vmem:[#allocation5 + $0x34] sm:$0xf]
    %v99 = vld [vmem:[#allocation5 + $0x38] sm:$0xf]
    %v100 = vld [vmem:[#allocation5 + $0x3c] sm:$0xf]
    %v101 = vld [vmem:[%s2] sm:$0x1]
    %v103 = vlaneseq
    %v104 = vshrl.u32 %v103, 7
    %v105 = vsub.s32 0, %v104
    %v106 = vrot.slane %v101, %v105
    %v110 = vunpack.c.l.b16 %v83
    %v111 = vunpack.c.l.b16 %v84
    %v112 = vpack.c.b16 %v111, %v110
    %v130 = vunpack.c.l.b16 %v85
    %v131 = vunpack.c.l.b16 %v86
    %v132 = vunpack.c.l.b16 %v87
    %v133 = vunpack.c.l.b16 %v88
    %v134 = vunpack.c.l.b16 %v89
    %v135 = vunpack.c.l.b16 %v90
    %v136 = vunpack.c.l.b16 %v91
    %v137 = vunpack.c.l.b16 %v92
    %v138 = vunpack.c.l.b16 %v93
    %v139 = vunpack.c.l.b16 %v94
    %v140 = vunpack.c.l.b16 %v95
    %v141 = vunpack.c.l.b16 %v96
    %v142 = vunpack.c.l.b16 %v97
    %v143 = vunpack.c.l.b16 %v98
    %v144 = vunpack.c.l.b16 %v99
    %v145 = vunpack.c.l.b16 %v100
    %v146 = vpack.c.b16 %v131, %v130
    %v147 = vpack.c.b16 %v133, %v132
    %v148 = vpack.c.b16 %v135, %v134
    %v149 = vpack.c.b16 %v137, %v136
    %v150 = vpack.c.b16 %v139, %v138
    %v151 = vpack.c.b16 %v141, %v140
    %v152 = vpack.c.b16 %v143, %v142
    %v153 = vpack.c.b16 %v145, %v144
    %162 = vmatprep.subr.bf16.mxu0 0
    %163 = vmatpush1.bf16.msra.mxu0 %v146
    %164 = vmatprep.subr.bf16.mxu0 0
    %165 = vmatpush1.bf16.msra.mxu0 %v147
    %166 = vmatprep.subr.bf16.mxu0 0
    %167 = vmatpush1.bf16.msra.mxu0 %v148
    %168 = vmatprep.subr.bf16.mxu0 0
    %169 = vmatpush1.bf16.msra.mxu0 %v149
    %170 = vmatprep.subr.bf16.mxu0 0
    %171 = vmatpush1.bf16.msra.mxu0 %v150
    %172 = vmatprep.subr.bf16.mxu0 0
    %173 = vmatpush1.bf16.msra.mxu0 %v151
    %174 = vmatprep.subr.bf16.mxu0 0
    %175 = vmatpush1.bf16.msra.mxu0 %v152
    %176 = vmatprep.subr.bf16.mxu0 0
    %177 = vmatpush1.bf16.msra.mxu0 %v153
    %178 = vmatprep.subr.bf16.mxu0 0
    %179 = vmatpush1.bf16.msra.mxu0 0
    %180 = vmatprep.subr.bf16.mxu0 0
    %181 = vmatpush1.bf16.msra.mxu0 0
    %182 = vmatprep.subr.bf16.mxu0 0
    %183 = vmatpush1.bf16.msra.mxu0 0
    %184 = vmatprep.subr.bf16.mxu0 0
    %185 = vmatpush1.bf16.msra.mxu0 0
    %186 = vmatprep.subr.bf16.mxu0 0
    %187 = vmatpush1.bf16.msra.mxu0 0
    %188 = vmatprep.subr.bf16.mxu0 0
    %189 = vmatpush1.bf16.msra.mxu0 0
    %190 = vmatprep.subr.bf16.mxu0 0
    %191 = vmatpush1.bf16.msra.mxu0 0
    %192 = vmatprep.subr.bf16.mxu0 0
    %193 = vmatpush1.bf16.msra.mxu0 0
    %194 = vmatprep.mubr.bf16.mxu0 0
    %195 = vmatmul.mubr.bf16.gmra.mrb[0].mxu0 %v112
    %v196 = vpop.f32.mrb[0].mxu0
    %v197 = vadd.f32 %v106, %v196
    %v198 = vpop.f32.mrb[0].mxu0
    %v199 = vpop.f32.mrb[0].mxu0
    %v200 = vadd.f32 %v106, %v199
    %v201 = vpop.f32.mrb[0].mxu0
    %202 = vdwg.mxu0
    %v203 = vpack.c.bf16 %v200, %v197
    %v204 = vmax.bf16 %v203, 0
    %v205 = vld [vmem:[#allocation7] sm:$0xf]
    %v206 = vld [vmem:[#allocation7 + $0x4] sm:$0xf]
    %v207 = vld [vmem:[#allocation7 + $0x8] sm:$0xf]
    %v208 = vld [vmem:[#allocation7 + $0xc] sm:$0xf]
    %v209 = vld [vmem:[#allocation7 + $0x10] sm:$0xf]
    %v210 = vld [vmem:[#allocation7 + $0x14] sm:$0xf]
    %v211 = vld [vmem:[#allocation7 + $0x18] sm:$0xf]
    %v212 = vld [vmem:[#allocation7 + $0x1c] sm:$0xf]
    %v213 = vld [vmem:[#allocation7 + $0x20] sm:$0xf]
    %v214 = vld [vmem:[#allocation7 + $0x24] sm:$0xf]
    %v215 = vld [vmem:[#allocation7 + $0x28] sm:$0xf]
    %v216 = vld [vmem:[#allocation7 + $0x2c] sm:$0xf]
    %v217 = vld [vmem:[#allocation7 + $0x30] sm:$0xf]
    %v218 = vld [vmem:[#allocation7 + $0x34] sm:$0xf]
    %v219 = vld [vmem:[#allocation7 + $0x38] sm:$0xf]
    %v220 = vld [vmem:[#allocation7 + $0x3c] sm:$0xf]
    %v221 = vld [vmem:[%s4] sm:$0x1]
    %v223 = vlaneseq
    %v224 = vshrl.u32 %v223, 7
    %v225 = vsub.s32 0, %v224
    %v226 = vrot.slane %v221, %v225
    %v244 = vunpack.c.l.b16 %v205
    %v245 = vunpack.c.l.b16 %v206
    %v246 = vunpack.c.l.b16 %v207
    %v247 = vunpack.c.l.b16 %v208
    %v248 = vunpack.c.l.b16 %v209
    %v249 = vunpack.c.l.b16 %v210
    %v250 = vunpack.c.l.b16 %v211
    %v251 = vunpack.c.l.b16 %v212
    %v252 = vunpack.c.l.b16 %v213
    %v253 = vunpack.c.l.b16 %v214
    %v254 = vunpack.c.l.b16 %v215
    %v255 = vunpack.c.l.b16 %v216
    %v256 = vunpack.c.l.b16 %v217
    %v257 = vunpack.c.l.b16 %v218
    %v258 = vunpack.c.l.b16 %v219
    %v259 = vunpack.c.l.b16 %v220
    %v260 = vpack.c.b16 %v245, %v244
    %v261 = vpack.c.b16 %v247, %v246
    %v262 = vpack.c.b16 %v249, %v248
    %v263 = vpack.c.b16 %v251, %v250
    %v264 = vpack.c.b16 %v253, %v252
    %v265 = vpack.c.b16 %v255, %v254
    %v266 = vpack.c.b16 %v257, %v256
    %v267 = vpack.c.b16 %v259, %v258
    %276 = vmatprep.subr.bf16.mxu0 0
    %277 = vmatpush1.bf16.msra.mxu0 %v260
    %278 = vmatprep.subr.bf16.mxu0 0
    %279 = vmatpush1.bf16.msra.mxu0 %v261
    %280 = vmatprep.subr.bf16.mxu0 0
    %281 = vmatpush1.bf16.msra.mxu0 %v262
    %282 = vmatprep.subr.bf16.mxu0 0
    %283 = vmatpush1.bf16.msra.mxu0 %v263
    %284 = vmatprep.subr.bf16.mxu0 0
    %285 = vmatpush1.bf16.msra.mxu0 %v264
    %286 = vmatprep.subr.bf16.mxu0 0
    %287 = vmatpush1.bf16.msra.mxu0 %v265
    %288 = vmatprep.subr.bf16.mxu0 0
    %289 = vmatpush1.bf16.msra.mxu0 %v266
    %290 = vmatprep.subr.bf16.mxu0 0
    %291 = vmatpush1.bf16.msra.mxu0 %v267
    %292 = vmatprep.subr.bf16.mxu0 0
    %293 = vmatpush1.bf16.msra.mxu0 0
    %294 = vmatprep.subr.bf16.mxu0 0
    %295 = vmatpush1.bf16.msra.mxu0 0
    %296 = vmatprep.subr.bf16.mxu0 0
    %297 = vmatpush1.bf16.msra.mxu0 0
    %298 = vmatprep.subr.bf16.mxu0 0
    %299 = vmatpush1.bf16.msra.mxu0 0
    %300 = vmatprep.subr.bf16.mxu0 0
    %301 = vmatpush1.bf16.msra.mxu0 0
    %302 = vmatprep.subr.bf16.mxu0 0
    %303 = vmatpush1.bf16.msra.mxu0 0
    %304 = vmatprep.subr.bf16.mxu0 0
    %305 = vmatpush1.bf16.msra.mxu0 0
    %306 = vmatprep.subr.bf16.mxu0 0
    %307 = vmatpush1.bf16.msra.mxu0 0
    %308 = vmatprep.mubr.bf16.mxu0 0
    %309 = vmatmul.mubr.bf16.gmra.mrb[0].mxu0 %v204
    %v310 = vpop.f32.mrb[0].mxu0
    %v311 = vadd.f32 %v226, %v310
    %v312 = vpop.f32.mrb[0].mxu0
    %v313 = vpop.f32.mrb[0].mxu0
    %v314 = vadd.f32 %v226, %v313
    %v315 = vpop.f32.mrb[0].mxu0
    %316 = vdwg.mxu0
    %v317 = vpack.c.bf16 %v314, %v311
    %v318 = vmax.bf16 %v317, 0
    %v319 = vld [vmem:[#allocation8] sm:$0xf]
    %v320 = vld [vmem:[#allocation8 + $0x4] sm:$0xf]
    %v321 = vld [vmem:[#allocation8 + $0x8] sm:$0xf]
    %v322 = vld [vmem:[#allocation8 + $0xc] sm:$0xf]
    %v323 = vld [vmem:[#allocation8 + $0x10] sm:$0xf]
    %v324 = vld [vmem:[#allocation8 + $0x14] sm:$0xf]
    %v325 = vld [vmem:[#allocation8 + $0x18] sm:$0xf]
    %v326 = vld [vmem:[#allocation8 + $0x1c] sm:$0xf]
    %v327 = vld [vmem:[#allocation8 + $0x20] sm:$0xf]
    %v328 = vld [vmem:[#allocation8 + $0x24] sm:$0xf]
    %v329 = vld [vmem:[#allocation8 + $0x28] sm:$0xf]
    %v330 = vld [vmem:[#allocation8 + $0x2c] sm:$0xf]
    %v331 = vld [vmem:[#allocation8 + $0x30] sm:$0xf]
    %v332 = vld [vmem:[#allocation8 + $0x34] sm:$0xf]
    %v333 = vld [vmem:[#allocation8 + $0x38] sm:$0xf]
    %v334 = vld [vmem:[#allocation8 + $0x3c] sm:$0xf]
    %v335 = vld [vmem:[%s6] sm:$0x1]
    %v337 = vlaneseq
    %v338 = vshrl.u32 %v337, 7
    %v339 = vsub.s32 0, %v338
    %v340 = vrot.slane %v335, %v339
    %v358 = vunpack.c.l.b16 %v319
    %v359 = vunpack.c.l.b16 %v320
    %v360 = vunpack.c.l.b16 %v321
    %v361 = vunpack.c.l.b16 %v322
    %v362 = vunpack.c.l.b16 %v323
    %v363 = vunpack.c.l.b16 %v324
    %v364 = vunpack.c.l.b16 %v325
    %v365 = vunpack.c.l.b16 %v326
    %v366 = vunpack.c.l.b16 %v327
    %v367 = vunpack.c.l.b16 %v328
    %v368 = vunpack.c.l.b16 %v329
    %v369 = vunpack.c.l.b16 %v330
    %v370 = vunpack.c.l.b16 %v331
    %v371 = vunpack.c.l.b16 %v332
    %v372 = vunpack.c.l.b16 %v333
    %v373 = vunpack.c.l.b16 %v334
    %v374 = vpack.c.b16 %v359, %v358
    %v375 = vpack.c.b16 %v361, %v360
    %v376 = vpack.c.b16 %v363, %v362
    %v377 = vpack.c.b16 %v365, %v364
    %v378 = vpack.c.b16 %v367, %v366
    %v379 = vpack.c.b16 %v369, %v368
    %v380 = vpack.c.b16 %v371, %v370
    %v381 = vpack.c.b16 %v373, %v372
    %390 = vmatprep.subr.bf16.mxu0 0
    %391 = vmatpush1.bf16.msra.mxu0 %v374
    %392 = vmatprep.subr.bf16.mxu0 0
    %393 = vmatpush1.bf16.msra.mxu0 %v375
    %394 = vmatprep.subr.bf16.mxu0 0
    %395 = vmatpush1.bf16.msra.mxu0 %v376
    %396 = vmatprep.subr.bf16.mxu0 0
    %397 = vmatpush1.bf16.msra.mxu0 %v377
    %398 = vmatprep.subr.bf16.mxu0 0
    %399 = vmatpush1.bf16.msra.mxu0 %v378
    %400 = vmatprep.subr.bf16.mxu0 0
    %401 = vmatpush1.bf16.msra.mxu0 %v379
    %402 = vmatprep.subr.bf16.mxu0 0
    %403 = vmatpush1.bf16.msra.mxu0 %v380
    %404 = vmatprep.subr.bf16.mxu0 0
    %405 = vmatpush1.bf16.msra.mxu0 %v381
    %406 = vmatprep.subr.bf16.mxu0 0
    %407 = vmatpush1.bf16.msra.mxu0 0
    %408 = vmatprep.subr.bf16.mxu0 0
    %409 = vmatpush1.bf16.msra.mxu0 0
    %410 = vmatprep.subr.bf16.mxu0 0
    %411 = vmatpush1.bf16.msra.mxu0 0
    %412 = vmatprep.subr.bf16.mxu0 0
    %413 = vmatpush1.bf16.msra.mxu0 0
    %414 = vmatprep.subr.bf16.mxu0 0
    %415 = vmatpush1.bf16.msra.mxu0 0
    %416 = vmatprep.subr.bf16.mxu0 0
    %417 = vmatpush1.bf16.msra.mxu0 0
    %418 = vmatprep.subr.bf16.mxu0 0
    %419 = vmatpush1.bf16.msra.mxu0 0
    %420 = vmatprep.subr.bf16.mxu0 0
    %421 = vmatpush1.bf16.msra.mxu0 0
    %422 = vmatprep.mubr.bf16.mxu0 0
    %423 = vmatmul.mubr.bf16.gmra.mrb[0].mxu0 %v318
    %v424 = vpop.f32.mrb[0].mxu0
    %v425 = vadd.f32 %v340, %v424
    %v426 = vpop.f32.mrb[0].mxu0
    %v427 = vpop.f32.mrb[0].mxu0
    %v428 = vadd.f32 %v340, %v427
    %v429 = vpop.f32.mrb[0].mxu0
    %430 = vdwg.mxu0
    %431 = vst [vmem:[#allocation10] sm:$0xff] %v425
    %432 = vst [vmem:[#allocation10 + $0x8] sm:$0xff] %v428
    // Predicated region
    $region46: #{tpu_custom_call.1} parent=1 // pred_check
      _
    $region47: #{tpu_custom_call.1} parent=1 // pred_check_branch
      %434 = sbr.rel (0) target = $region49
    $region48: #{tpu_custom_call.1} parent=1 // pred_region
      %s436 = ssub.s32 256, 256
      %437 = vsyncadd [#allocation4], %s436
      %s438 = sshll.u32 [#allocation10], 4
      %s439 = int_to_ptr.vmem [resolvable:$true] %s438
      %444 = dma.vmem_to_hbm [thread:$0]  %s439, 256, %s7, [#allocation4], 128, 128, 8
    $region49: #{tpu_custom_call.1} parent=1 // pred_fallthru
      _
    // Predicated region
    $region50: #{tpu_custom_call.1} parent=1 // pred_check
      _
    $region51: #{tpu_custom_call.1} parent=1 // pred_check_branch
      %446 = sbr.rel (0) target = $region53
    $region52: #{tpu_custom_call.1} parent=1 // pred_region
      %447 = dma.done [#allocation4], 256
    $region53: #{tpu_custom_call.1} parent=1 // pred_fallthru
      _
    %448 = vsyncpa [#allocation3], 1
    %449 = vsyncpa [#allocation6], 1
    %450 = vsyncpa [#allocation9], 1
    %451 = vsyncpa [#allocation4], 1

// kernel: tpu_custom_call.1
$region0: #{tpu_custom_call.1}
  #allocation0 [shape = 'u32[]', space=smem, size = 0x4, offset = 0x4, fixed_abs, tag = 'smem constant byte address 0x4 - core index']
  #allocation1 [shape = 'u32[144,128]{1,0:T(1,128)}', space=vmem, size = 0x12000, scoped, tag = 'internal scratch']
  %s0 = inlined_call_operand.hbm [shape: bf16[16,128], index: 0, kind: input, shape index: {}]
  %s1 = inlined_call_operand.hbm [shape: bf16[128,128], index: 1, kind: input, shape index: {}]
  %s2 = inlined_call_operand.vmem [shape: f32[1,128], index: 2, kind: input, shape index: {}]
  %s3 = inlined_call_operand.hbm [shape: bf16[16,128], index: 3, kind: output, shape index: {}]
  %s4 = sld [smem:[#allocation0]]
  $region30: #{tpu_custom_call.1} parent=0
    _
  %s6 = ssub.s32 1, %s4
  %s7 = scalar_select 0, %s6, %s4
  $region1: #{tpu_custom_call.1} parent=0
    #allocation2 [shape = 'u8[4096]{0}', space=vmem, size = 0x1000, scoped, tag = 'input window, operand 0, single buffered']
    #allocation3 [shape = 's32[1]{0}', space=sflag, size = 0x4, scoped, tag = 'scoped memory for tpu_custom_call.1']
    #allocation4 [shape = 's32[1]{0}', space=sflag, size = 0x4, scoped, tag = 'scoped memory for tpu_custom_call.1']
    #allocation5 [shape = 'u8[32768]{0}', space=vmem, size = 0x8000, scoped, tag = 'input window, operand 1, single buffered']
    #allocation6 [shape = 's32[1]{0}', space=sflag, size = 0x4, scoped, tag = 'scoped memory for tpu_custom_call.1']
    #allocation7 [shape = 'u8[4096]{0}', space=vmem, size = 0x1000, scoped, tag = 'output window, operand 0, single buffered']
    %8 = vsyncpa [#allocation3], 0
    %9 = vsyncpa [#allocation6], 0
    %10 = vsyncpa [#allocation4], 0
    // Predicated region
    $region2: #{tpu_custom_call.1} parent=1 // pred_check
      _
    $region3: #{tpu_custom_call.1} parent=1 // pred_check_branch
      %12 = sbr.rel (0) target = $region5
    $region4: #{tpu_custom_call.1} parent=1 // pred_region
      %s14 = ssub.s32 128, 128
      %15 = vsyncadd [#allocation3], %s14
      %s16 = sshll.u32 [#allocation2], 4
      %s17 = int_to_ptr.vmem [resolvable:$true] %s16
      %22 = dma.hbm_to_vmem [thread:$0]  %s0, 128, %s17, [#allocation3], 64, 64, 4
    $region5: #{tpu_custom_call.1} parent=1 // pred_fallthru
      _
    // Predicated region
    $region6: #{tpu_custom_call.1} parent=1 // pred_check
      _
    $region7: #{tpu_custom_call.1} parent=1 // pred_check_branch
      %24 = sbr.rel (0) target = $region9
    $region8: #{tpu_custom_call.1} parent=1 // pred_region
      %s26 = ssub.s32 1024, 1024
      %27 = vsyncadd [#allocation6], %s26
      %s28 = sshll.u32 [#allocation5], 4
      %s29 = int_to_ptr.vmem [resolvable:$true] %s28
      %34 = dma.hbm_to_vmem [thread:$0]  %s1, 1024, %s29, [#allocation6], 64, 64, 4
    $region9: #{tpu_custom_call.1} parent=1 // pred_fallthru
      _
    // Predicated region
    $region10: #{tpu_custom_call.1} parent=1 // pred_check
      _
    $region11: #{tpu_custom_call.1} parent=1 // pred_check_branch
      %36 = sbr.rel (0) target = $region13
    $region12: #{tpu_custom_call.1} parent=1 // pred_region
      _
    $region13: #{tpu_custom_call.1} parent=1 // pred_fallthru
      _
    // Predicated region
    $region14: #{tpu_custom_call.1} parent=1 // pred_check
      _
    $region15: #{tpu_custom_call.1} parent=1 // pred_check_branch
      %38 = sbr.rel (0) target = $region17
    $region16: #{tpu_custom_call.1} parent=1 // pred_region
      %39 = dma.done [#allocation3], 128
    $region17: #{tpu_custom_call.1} parent=1 // pred_fallthru
      _
    // Predicated region
    $region18: #{tpu_custom_call.1} parent=1 // pred_check
      _
    $region19: #{tpu_custom_call.1} parent=1 // pred_check_branch
      %41 = sbr.rel (0) target = $region21
    $region20: #{tpu_custom_call.1} parent=1 // pred_region
      %42 = dma.done [#allocation6], 1024
    $region21: #{tpu_custom_call.1} parent=1 // pred_fallthru
      _
    %v44 = vld [vmem:[#allocation2] sm:$0xf]
    %v45 = vld [vmem:[#allocation2 + $0x4] sm:$0xf]
    %v46 = vld [vmem:[#allocation5] sm:$0xf]
    %v47 = vld [vmem:[#allocation5 + $0x4] sm:$0xf]
    %v48 = vld [vmem:[#allocation5 + $0x8] sm:$0xf]
    %v49 = vld [vmem:[#allocation5 + $0xc] sm:$0xf]
    %v50 = vld [vmem:[#allocation5 + $0x10] sm:$0xf]
    %v51 = vld [vmem:[#allocation5 + $0x14] sm:$0xf]
    %v52 = vld [vmem:[#allocation5 + $0x18] sm:$0xf]
    %v53 = vld [vmem:[#allocation5 + $0x1c] sm:$0xf]
    %v54 = vld [vmem:[#allocation5 + $0x20] sm:$0xf]
    %v55 = vld [vmem:[#allocation5 + $0x24] sm:$0xf]
    %v56 = vld [vmem:[#allocation5 + $0x28] sm:$0xf]
    %v57 = vld [vmem:[#allocation5 + $0x2c] sm:$0xf]
    %v58 = vld [vmem:[#allocation5 + $0x30] sm:$0xf]
    %v59 = vld [vmem:[#allocation5 + $0x34] sm:$0xf]
    %v60 = vld [vmem:[#allocation5 + $0x38] sm:$0xf]
    %v61 = vld [vmem:[#allocation5 + $0x3c] sm:$0xf]
    %v62 = vld [vmem:[%s2] sm:$0x1]
    %v64 = vlaneseq
    %v65 = vshrl.u32 %v64, 7
    %v66 = vsub.s32 0, %v65
    %v67 = vrot.slane %v62, %v66
    %v71 = vunpack.c.l.b16 %v44
    %v72 = vunpack.c.l.b16 %v45
    %v73 = vpack.c.b16 %v72, %v71
    %v91 = vunpack.c.l.b16 %v46
    %v92 = vunpack.c.l.b16 %v47
    %v93 = vunpack.c.l.b16 %v48
    %v94 = vunpack.c.l.b16 %v49
    %v95 = vunpack.c.l.b16 %v50
    %v96 = vunpack.c.l.b16 %v51
    %v97 = vunpack.c.l.b16 %v52
    %v98 = vunpack.c.l.b16 %v53
    %v99 = vunpack.c.l.b16 %v54
    %v100 = vunpack.c.l.b16 %v55
    %v101 = vunpack.c.l.b16 %v56
    %v102 = vunpack.c.l.b16 %v57
    %v103 = vunpack.c.l.b16 %v58
    %v104 = vunpack.c.l.b16 %v59
    %v105 = vunpack.c.l.b16 %v60
    %v106 = vunpack.c.l.b16 %v61
    %v107 = vpack.c.b16 %v92, %v91
    %v108 = vpack.c.b16 %v94, %v93
    %v109 = vpack.c.b16 %v96, %v95
    %v110 = vpack.c.b16 %v98, %v97
    %v111 = vpack.c.b16 %v100, %v99
    %v112 = vpack.c.b16 %v102, %v101
    %v113 = vpack.c.b16 %v104, %v103
    %v114 = vpack.c.b16 %v106, %v105
    %123 = vmatprep.subr.bf16.mxu0 0
    %124 = vmatpush1.bf16.msra.mxu0 %v107
    %125 = vmatprep.subr.bf16.mxu0 0
    %126 = vmatpush1.bf16.msra.mxu0 %v108
    %127 = vmatprep.subr.bf16.mxu0 0
    %128 = vmatpush1.bf16.msra.mxu0 %v109
    %129 = vmatprep.subr.bf16.mxu0 0
    %130 = vmatpush1.bf16.msra.mxu0 %v110
    %131 = vmatprep.subr.bf16.mxu0 0
    %132 = vmatpush1.bf16.msra.mxu0 %v111
    %133 = vmatprep.subr.bf16.mxu0 0
    %134 = vmatpush1.bf16.msra.mxu0 %v112
    %135 = vmatprep.subr.bf16.mxu0 0
    %136 = vmatpush1.bf16.msra.mxu0 %v113
    %137 = vmatprep.subr.bf16.mxu0 0
    %138 = vmatpush1.bf16.msra.mxu0 %v114
    %139 = vmatprep.subr.bf16.mxu0 0
    %140 = vmatpush1.bf16.msra.mxu0 0
    %141 = vmatprep.subr.bf16.mxu0 0
    %142 = vmatpush1.bf16.msra.mxu0 0
    %143 = vmatprep.subr.bf16.mxu0 0
    %144 = vmatpush1.bf16.msra.mxu0 0
    %145 = vmatprep.subr.bf16.mxu0 0
    %146 = vmatpush1.bf16.msra.mxu0 0
    %147 = vmatprep.subr.bf16.mxu0 0
    %148 = vmatpush1.bf16.msra.mxu0 0
    %149 = vmatprep.subr.bf16.mxu0 0
    %150 = vmatpush1.bf16.msra.mxu0 0
    %151 = vmatprep.subr.bf16.mxu0 0
    %152 = vmatpush1.bf16.msra.mxu0 0
    %153 = vmatprep.subr.bf16.mxu0 0
    %154 = vmatpush1.bf16.msra.mxu0 0
    %155 = vmatprep.mubr.bf16.mxu0 0
    %156 = vmatmul.mubr.bf16.gmra.mrb[0].mxu0 %v73
    %v157 = vpop.f32.mrb[0].mxu0
    %v158 = vadd.f32 %v67, %v157
    %v159 = vpop.f32.mrb[0].mxu0
    %v160 = vpop.f32.mrb[0].mxu0
    %v161 = vadd.f32 %v67, %v160
    %v162 = vpop.f32.mrb[0].mxu0
    %163 = vdwg.mxu0
    %v164 = vmax.f32 %v158, 0.0
    %v165 = vmax.f32 %v161, 0.0
    %v166 = vpack.c.bf16 %v165, %v164
    %v168 = vunpack.c.l.b16 %v166
    %v169 = vunpack.c.h.b16 %v166
    %v170 = vpack.c.b16 %v168, %v168
    %v171 = vpack.c.b16 %v169, %v169
    %174 = vst [vmem:[#allocation7] sm:$0xf] %v170
    %175 = vst [vmem:[#allocation7 + $0x4] sm:$0xf] %v171
    // Predicated region
    $region22: #{tpu_custom_call.1} parent=1 // pred_check
      _
    $region23: #{tpu_custom_call.1} parent=1 // pred_check_branch
      %177 = sbr.rel (0) target = $region25
    $region24: #{tpu_custom_call.1} parent=1 // pred_region
      %s179 = ssub.s32 128, 128
      %180 = vsyncadd [#allocation4], %s179
      %s181 = sshll.u32 [#allocation7], 4
      %s182 = int_to_ptr.vmem [resolvable:$true] %s181
      %187 = dma.vmem_to_hbm [thread:$0]  %s182, 128, %s3, [#allocation4], 64, 64, 4
    $region25: #{tpu_custom_call.1} parent=1 // pred_fallthru
      _
    // Predicated region
    $region26: #{tpu_custom_call.1} parent=1 // pred_check
      _
    $region27: #{tpu_custom_call.1} parent=1 // pred_check_branch
      %189 = sbr.rel (0) target = $region29
    $region28: #{tpu_custom_call.1} parent=1 // pred_region
      %190 = dma.done [#allocation4], 128
    $region29: #{tpu_custom_call.1} parent=1 // pred_fallthru
      _
    %191 = vsyncpa [#allocation3], 1
    %192 = vsyncpa [#allocation6], 1
    %193 = vsyncpa [#allocation4], 1

</llo_original>
